<compile_context>
chip_gen: v5e
topology: v5e:2x2
jax: 0.10.0
libtpu: 0.0.40
codegen_flags: <defaults>
</compile_context>

<pallas_src>
import math

import jax
import jax.numpy as jnp
import numpy as np
from jax.experimental import pallas as pl
from jax.experimental.pallas import tpu as pltpu

SELU_ALPHA = 1.6732632423543772
SELU_SCALE = 1.0507009873554805
HIGHEST = jax.lax.Precision.HIGHEST


# ------------------------------- kernel ------------------------------------ #

def _make_kernel(n_layers, ks, L, B):
    pad = (ks - 1) // 2
    BL = B * L
    inv_L = 1.0 / L

    def kernel(*refs):
        x_ref = refs[0]
        out_ref = refs[-1]
        layer_refs = refs[1:-1]

        # ---- hoisted index helpers (computed once, reused by all layers) ----
        pos = jax.lax.broadcasted_iota(jnp.int32, (1, BL), 1) % L       # (1, BL)
        tap_masks = []
        for k in range(ks):
            d = k - pad
            tap_masks.append(
                None if d == 0 else jnp.logical_and(pos + d >= 0, pos + d < L))

        lane_i = jax.lax.broadcasted_iota(jnp.int32, (B, BL), 1)
        batch_i = jax.lax.broadcasted_iota(jnp.int32, (B, BL), 0)
        in_batch = jnp.logical_and(lane_i >= batch_i * L,
                                   lane_i < (batch_i + 1) * L)          # (B, BL)
        sel = jnp.where(in_batch, 1.0, 0.0)                             # one-hot f32
        sel_mean = sel * inv_L                                          # per-batch mean weights

        h = x_ref[...].astype(jnp.float32)                              # (1, BL), Cin=1

        for li in range(n_layers):
            w_ref, b_ref, se1_ref, se2_ref = layer_refs[4 * li: 4 * li + 4]

            # Conv1d 'same' with BatchNorm folded in: one MXU matmul over ks*cin.
            parts = []
            for k in range(ks):
                d = k - pad
                if d == 0:
                    parts.append(h)
                else:
                    xs = pltpu.roll(h, shift=(-d) % BL, axis=1)
                    parts.append(jnp.where(tap_masks[k], xs, 0.0))
            stacked = jnp.concatenate(parts, axis=0).astype(jnp.bfloat16)  # (ks*cin, BL)
            y = jnp.dot(w_ref[...], stacked,
                        preferred_element_type=jnp.float32) + b_ref[...]    # (cout, BL)

            # SELU (f32 element-wise).
            h = SELU_SCALE * jnp.where(
                y > 0.0, y, SELU_ALPHA * (jnp.exp(jnp.minimum(y, 0.0)) - 1.0))

            # SE: per-batch global mean -> FC -> ReLU -> FC -> sigmoid -> gate.
            m = jax.lax.dot_general(                                        # (cout, B)
                h, sel_mean, (((1,), (1,)), ((), ())),
                preferred_element_type=jnp.float32)
            z = jnp.maximum(jnp.dot(se1_ref[...], m,
                                    preferred_element_type=jnp.float32), 0.0)
            g = jax.nn.sigmoid(jnp.dot(se2_ref[...], z,
                                       preferred_element_type=jnp.float32))  # (cout, B)
            gate = jnp.dot(g, sel, preferred_element_type=jnp.float32)        # (cout, BL)
            h = h * gate

        # AdaptiveAvgPool1d(1) + flatten, stored lane-dense as (B, C_out).
        out_ref[...] = jax.lax.dot_general(
            sel_mean, h, (((1,), (1,)), ((), ())),
            preferred_element_type=jnp.float32)

    return kernel


# ------------------------------- wrapper ----------------------------------- #

@jax.jit
def cdcnn_forward(x, layers):
    """x: (B, features) f32 -> (B, num_grown_kernels) f32."""
    B, L = x.shape
    n_layers = len(layers)
    ks = layers[0]["w"].shape[-1]

    flat = []
    for p in layers:
        cout, cin, _ = p["w"].shape
        # Fold BatchNorm (inference) into the conv: W' = scale*W, b' = b*scale + shift.
        w_f = p["w"] * p["scale"][:, None, None]                     # (cout, cin, ks)
        w2 = jnp.transpose(w_f, (0, 2, 1)).reshape(cout, ks * cin)   # row = k*cin + c
        b2 = (p["b"] * p["scale"] + p["shift"]).reshape(cout, 1)
        flat += [w2.astype(jnp.bfloat16),
                 b2.astype(jnp.float32),
                 p["se_w1"].astype(jnp.float32),
                 p["se_w2"].astype(jnp.float32)]

    c_out = layers[-1]["w"].shape[0]
    x2 = x.reshape(1, B * L).astype(jnp.float32)     # batch folded onto lanes

    return pl.pallas_call(
        _make_kernel(n_layers, ks, L, B),
        out_shape=jax.ShapeDtypeStruct((B, c_out), jnp.float32),
    )(x2, *flat)


# --------------------------- parameter creation ----------------------------- #

def init_params(key, cfg):
    K1 = cfg["num_kernels"]
    K2 = K1 * cfg["kernel_growth_ratio"]
    ks = cfg["kernel_size"]
    red = cfg["reduction_ratio"]
    ng = cfg["num_gconv"]
    eps = 1e-5

    # (cin, cout) per conv block: conv1, conv2, gconv1, gconv[1..ng-1]
    dims = [(1, K1), (K1, K1), (K1, K2)] + [(K2, K2)] * (ng - 1)
    layers = []
    for (cin, cout) in dims:
        key, k0, k1, k2, k3, k4, k5, k6, k7 = jax.random.split(key, 9)
        w = jax.random.normal(k0, (cout, cin, ks), jnp.float32) / math.sqrt(cin * ks)
        b = 0.1 * jax.random.normal(k1, (cout,), jnp.float32)
        gamma = 1.0 + 0.1 * jax.random.normal(k2, (cout,), jnp.float32)
        beta = 0.1 * jax.random.normal(k3, (cout,), jnp.float32)
        rmean = 0.05 * jax.random.normal(k4, (cout,), jnp.float32)
        rvar = 1.0 + 0.2 * jax.random.uniform(k5, (cout,), jnp.float32)
        scale = gamma / jnp.sqrt(rvar + eps)
        shift = beta - rmean * scale
        hidden = cout // 2 if cout < red else cout // red
        se_w1 = jax.random.normal(k6, (hidden, cout), jnp.float32) / math.sqrt(cout)
        se_w2 = jax.random.normal(k7, (cout, hidden), jnp.float32) / math.sqrt(hidden)
        layers.append(dict(w=w, b=b, scale=scale, shift=shift,
                           se_w1=se_w1, se_w2=se_w2))
    return layers


# ------------------------ pure-JAX reference (check) ------------------------ #

def reference_forward(x, layers):
    B, L = x.shape
    h = x.reshape(B, 1, L)
    for p in layers:
        y = jax.lax.conv_general_dilated(
            h, p["w"], window_strides=(1,), padding="SAME",
            dimension_numbers=("NCH", "OIH", "NCH"), precision=HIGHEST)
        y = y + p["b"].reshape(1, -1, 1)
        y = y * p["scale"].reshape(1, -1, 1) + p["shift"].reshape(1, -1, 1)
        y = jax.nn.selu(y)
        m = jnp.mean(y, axis=-1)                                     # (B, C)
        g = jnp.maximum(jnp.dot(m, p["se_w1"].T, precision=HIGHEST), 0.0)
        g = jax.nn.sigmoid(jnp.dot(g, p["se_w2"].T, precision=HIGHEST))
        h = y * g[:, :, None]
    return jnp.mean(h, axis=-1)                                      # (B, C_out)


# ---------------------------------- main ------------------------------------ #

if __name__ == "__main__":
    config = {
        "num_kernels": 8,
        "kernel_growth_ratio": 2,   # num_grown_kernels = 16
        "kernel_size": 3,
        "reduction_ratio": 4,
        "num_gconv": 2,
    }
    key = jax.random.PRNGKey(0)
    kx, kp = jax.random.split(key)
    x = jax.random.normal(kx, (2, 128), jnp.float32)   # (batch, features)

    layers = init_params(kp, config)

    out = jax.block_until_ready(cdcnn_forward(x, layers))

    ref = jax.block_until_ready(reference_forward(x, layers))
    # Tolerance reflects bf16 MXU operands (f32 accumulation) in the kernel
    # vs. the f32 HIGHEST-precision reference, compounded over 4 layers.
    np.testing.assert_allclose(np.asarray(out), np.asarray(ref),
                               rtol=2e-2, atol=2e-2)
    print("KERNEL_OK")
</pallas_src>

<mosaic_0001>
module attributes {stable_mosaic.version = 11 : i64} {
  func.func @kernel(%arg0: memref<1x256xf32, #tpu.memory_space<vmem>>, %arg1: memref<8x3xbf16, #tpu.memory_space<vmem>>, %arg2: memref<8x1xf32, #tpu.memory_space<vmem>>, %arg3: memref<2x8xf32, #tpu.memory_space<vmem>>, %arg4: memref<8x2xf32, #tpu.memory_space<vmem>>, %arg5: memref<8x24xbf16, #tpu.memory_space<vmem>>, %arg6: memref<8x1xf32, #tpu.memory_space<vmem>>, %arg7: memref<2x8xf32, #tpu.memory_space<vmem>>, %arg8: memref<8x2xf32, #tpu.memory_space<vmem>>, %arg9: memref<16x24xbf16, #tpu.memory_space<vmem>>, %arg10: memref<16x1xf32, #tpu.memory_space<vmem>>, %arg11: memref<4x16xf32, #tpu.memory_space<vmem>>, %arg12: memref<16x4xf32, #tpu.memory_space<vmem>>, %arg13: memref<16x48xbf16, #tpu.memory_space<vmem>>, %arg14: memref<16x1xf32, #tpu.memory_space<vmem>>, %arg15: memref<4x16xf32, #tpu.memory_space<vmem>>, %arg16: memref<16x4xf32, #tpu.memory_space<vmem>>, %arg17: memref<2x16xf32, #tpu.memory_space<vmem>>) attributes {dimension_semantics = [], scalar_prefetch = 0 : i64, scratch_operands = 0 : i64, tpu.core_type = #tpu.core_type<tc>} {
    %0 = tpu.iota {dimensions = array<i32: 1>} : vector<1x256xi32>
    %c128_i32 = arith.constant 128 : i32
    %c0_i32 = arith.constant 0 : i32
    %1 = arith.cmpi eq, %c128_i32, %c0_i32 : i32
    %c1_i32 = arith.constant 1 : i32
    %2 = arith.select %1, %c1_i32, %c128_i32 : i32
    %3 = vector.broadcast %2 : i32 to vector<1x256xi32>
    %4 = arith.remsi %0, %3 : vector<1x256xi32>
    %c0_i32_0 = arith.constant 0 : i32
    %5 = vector.broadcast %c0_i32_0 : i32 to vector<1x256xi32>
    %6 = arith.cmpi ne, %4, %5 : vector<1x256xi32>
    %c0_i32_1 = arith.constant 0 : i32
    %7 = vector.broadcast %c0_i32_1 : i32 to vector<1x256xi32>
    %8 = arith.cmpi slt, %4, %7 : vector<1x256xi32>
    %c0_i32_2 = arith.constant 0 : i32
    %9 = arith.cmpi slt, %2, %c0_i32_2 : i32
    %10 = vector.broadcast %9 : i1 to vector<1x256xi1>
    %11 = vector.broadcast %10 : vector<1x256xi1> to vector<1x256xi1>
    %12 = arith.xori %8, %11 : vector<1x256xi1>
    %13 = arith.andi %12, %6 : vector<1x256xi1>
    %14 = vector.broadcast %2 : i32 to vector<1x256xi32>
    %15 = arith.addi %4, %14 : vector<1x256xi32>
    %16 = arith.select %13, %15, %4 : vector<1x256xi1>, vector<1x256xi32>
    %c-1_i32 = arith.constant -1 : i32
    %17 = vector.broadcast %c-1_i32 : i32 to vector<1x256xi32>
    %18 = arith.addi %16, %17 : vector<1x256xi32>
    %c0_i32_3 = arith.constant 0 : i32
    %19 = vector.broadcast %c0_i32_3 : i32 to vector<1x256xi32>
    %20 = arith.cmpi sge, %18, %19 : vector<1x256xi32>
    %c-1_i32_4 = arith.constant -1 : i32
    %21 = vector.broadcast %c-1_i32_4 : i32 to vector<1x256xi32>
    %22 = arith.addi %16, %21 : vector<1x256xi32>
    %c128_i32_5 = arith.constant 128 : i32
    %23 = vector.broadcast %c128_i32_5 : i32 to vector<1x256xi32>
    %24 = arith.cmpi slt, %22, %23 : vector<1x256xi32>
    %25 = arith.andi %20, %24 : vector<1x256xi1>
    %c1_i32_6 = arith.constant 1 : i32
    %26 = vector.broadcast %c1_i32_6 : i32 to vector<1x256xi32>
    %27 = arith.addi %16, %26 : vector<1x256xi32>
    %c0_i32_7 = arith.constant 0 : i32
    %28 = vector.broadcast %c0_i32_7 : i32 to vector<1x256xi32>
    %29 = arith.cmpi sge, %27, %28 : vector<1x256xi32>
    %c1_i32_8 = arith.constant 1 : i32
    %30 = vector.broadcast %c1_i32_8 : i32 to vector<1x256xi32>
    %31 = arith.addi %16, %30 : vector<1x256xi32>
    %c128_i32_9 = arith.constant 128 : i32
    %32 = vector.broadcast %c128_i32_9 : i32 to vector<1x256xi32>
    %33 = arith.cmpi slt, %31, %32 : vector<1x256xi32>
    %34 = arith.andi %29, %33 : vector<1x256xi1>
    %35 = tpu.iota {dimensions = array<i32: 1>} : vector<2x256xi32>
    %36 = tpu.iota {dimensions = array<i32: 0>} : vector<2x256xi32>
    %c128_i32_10 = arith.constant 128 : i32
    %37 = vector.broadcast %c128_i32_10 : i32 to vector<2x256xi32>
    %38 = arith.muli %36, %37 : vector<2x256xi32>
    %39 = arith.cmpi sge, %35, %38 : vector<2x256xi32>
    %c1_i32_11 = arith.constant 1 : i32
    %40 = vector.broadcast %c1_i32_11 : i32 to vector<2x256xi32>
    %41 = arith.addi %36, %40 : vector<2x256xi32>
    %c128_i32_12 = arith.constant 128 : i32
    %42 = vector.broadcast %c128_i32_12 : i32 to vector<2x256xi32>
    %43 = arith.muli %41, %42 : vector<2x256xi32>
    %44 = arith.cmpi slt, %35, %43 : vector<2x256xi32>
    %45 = arith.andi %39, %44 : vector<2x256xi1>
    %cst = arith.constant 1.000000e+00 : f32
    %cst_13 = arith.constant 0.000000e+00 : f32
    %46 = vector.broadcast %cst : f32 to vector<2x256xf32>
    %47 = vector.broadcast %cst_13 : f32 to vector<2x256xf32>
    %48 = arith.select %45, %46, %47 : vector<2x256xi1>, vector<2x256xf32>
    %cst_14 = arith.constant 7.812500e-03 : f32
    %49 = vector.broadcast %cst_14 : f32 to vector<2x256xf32>
    %50 = arith.mulf %48, %49 : vector<2x256xf32>
    %c0 = arith.constant 0 : index
    %c0_15 = arith.constant 0 : index
    %51 = vector.load %arg0[%c0, %c0_15] : memref<1x256xf32, #tpu.memory_space<vmem>>, vector<1x256xf32>
    %c1_i32_16 = arith.constant 1 : i32
    %52 = tpu.dynamic_rotate %51 by %c1_i32_16 dim 1 : vector<1x256xf32>, i32 -> vector<1x256xf32>
    %cst_17 = arith.constant 0.000000e+00 : f32
    %53 = vector.broadcast %cst_17 : f32 to vector<1x256xf32>
    %54 = arith.select %25, %52, %53 : vector<1x256xi1>, vector<1x256xf32>
    %c255_i32 = arith.constant 255 : i32
    %55 = tpu.dynamic_rotate %51 by %c255_i32 dim 1 : vector<1x256xf32>, i32 -> vector<1x256xf32>
    %cst_18 = arith.constant 0.000000e+00 : f32
    %56 = vector.broadcast %cst_18 : f32 to vector<1x256xf32>
    %57 = arith.select %34, %55, %56 : vector<1x256xi1>, vector<1x256xf32>
    %58 = tpu.concatenate %54, %51, %57 in 0 : vector<1x256xf32>, vector<1x256xf32>, vector<1x256xf32> -> vector<3x256xf32>
    %59 = arith.truncf %58 : vector<3x256xf32> to vector<3x256xbf16>
    %c0_19 = arith.constant 0 : index
    %c0_20 = arith.constant 0 : index
    %60 = vector.load %arg1[%c0_19, %c0_20] : memref<8x3xbf16, #tpu.memory_space<vmem>>, vector<8x3xbf16>
    %cst_21 = arith.constant dense<0.000000e+00> : vector<8x256xf32>
    %61 = tpu.matmul %60, %59, %cst_21 {dimension_numbers = #tpu.dot_dimension_numbers<[1], [0], [0], [1], [0, 0, 1, 1], [], []>} : vector<8x3xbf16>, vector<3x256xbf16>, vector<8x256xf32> -> vector<8x256xf32>
    %c0_22 = arith.constant 0 : index
    %c0_23 = arith.constant 0 : index
    %62 = vector.load %arg2[%c0_22, %c0_23] : memref<8x1xf32, #tpu.memory_space<vmem>>, vector<8x1xf32>
    %63 = vector.broadcast %62 : vector<8x1xf32> to vector<8x256xf32>
    %64 = arith.addf %61, %63 : vector<8x256xf32>
    %cst_24 = arith.constant 0.000000e+00 : f32
    %65 = vector.broadcast %cst_24 : f32 to vector<8x256xf32>
    %66 = arith.cmpf ogt, %64, %65 : vector<8x256xf32>
    %cst_25 = arith.constant 0.000000e+00 : f32
    %67 = vector.broadcast %cst_25 : f32 to vector<8x256xf32>
    %68 = arith.minimumf %64, %67 : vector<8x256xf32>
    %69 = math.exp %68 : vector<8x256xf32>
    %cst_26 = arith.constant 1.000000e+00 : f32
    %70 = vector.broadcast %cst_26 : f32 to vector<8x256xf32>
    %71 = arith.subf %69, %70 : vector<8x256xf32>
    %cst_27 = arith.constant 1.67326319 : f32
    %72 = vector.broadcast %cst_27 : f32 to vector<8x256xf32>
    %73 = arith.mulf %72, %71 : vector<8x256xf32>
    %74 = arith.select %66, %64, %73 : vector<8x256xi1>, vector<8x256xf32>
    %cst_28 = arith.constant 1.05070102 : f32
    %75 = vector.broadcast %cst_28 : f32 to vector<8x256xf32>
    %76 = arith.mulf %75, %74 : vector<8x256xf32>
    %cst_29 = arith.constant dense<0.000000e+00> : vector<8x2xf32>
    %77 = tpu.matmul %76, %50, %cst_29 {dimension_numbers = #tpu.dot_dimension_numbers<[1], [1], [0], [0], [0, 0, 1, 0], [], []>} : vector<8x256xf32>, vector<2x256xf32>, vector<8x2xf32> -> vector<8x2xf32>
    %c0_30 = arith.constant 0 : index
    %c0_31 = arith.constant 0 : index
    %78 = vector.load %arg3[%c0_30, %c0_31] : memref<2x8xf32, #tpu.memory_space<vmem>>, vector<2x8xf32>
    %cst_32 = arith.constant dense<0.000000e+00> : vector<2x2xf32>
    %79 = tpu.matmul %78, %77, %cst_32 {dimension_numbers = #tpu.dot_dimension_numbers<[1], [0], [0], [1], [0, 0, 1, 1], [], []>} : vector<2x8xf32>, vector<8x2xf32>, vector<2x2xf32> -> vector<2x2xf32>
    %cst_33 = arith.constant 0.000000e+00 : f32
    %80 = vector.broadcast %cst_33 : f32 to vector<2x2xf32>
    %81 = arith.maximumf %79, %80 : vector<2x2xf32>
    %c0_34 = arith.constant 0 : index
    %c0_35 = arith.constant 0 : index
    %82 = vector.load %arg4[%c0_34, %c0_35] : memref<8x2xf32, #tpu.memory_space<vmem>>, vector<8x2xf32>
    %cst_36 = arith.constant dense<0.000000e+00> : vector<8x2xf32>
    %83 = tpu.matmul %82, %81, %cst_36 {dimension_numbers = #tpu.dot_dimension_numbers<[1], [0], [0], [1], [0, 0, 1, 1], [], []>} : vector<8x2xf32>, vector<2x2xf32>, vector<8x2xf32> -> vector<8x2xf32>
    %84 = arith.negf %83 : vector<8x2xf32>
    %85 = math.exp %84 : vector<8x2xf32>
    %cst_37 = arith.constant 1.000000e+00 : f32
    %86 = vector.broadcast %cst_37 : f32 to vector<8x2xf32>
    %87 = arith.addf %86, %85 : vector<8x2xf32>
    %88 = arith.divf %86, %87 : vector<8x2xf32>
    %cst_38 = arith.constant dense<0.000000e+00> : vector<8x256xf32>
    %89 = tpu.matmul %88, %48, %cst_38 {dimension_numbers = #tpu.dot_dimension_numbers<[1], [0], [0], [1], [0, 0, 1, 1], [], []>} : vector<8x2xf32>, vector<2x256xf32>, vector<8x256xf32> -> vector<8x256xf32>
    %90 = arith.mulf %76, %89 : vector<8x256xf32>
    %c1_i32_39 = arith.constant 1 : i32
    %91 = tpu.dynamic_rotate %90 by %c1_i32_39 dim 1 : vector<8x256xf32>, i32 -> vector<8x256xf32>
    %cst_40 = arith.constant 0.000000e+00 : f32
    %92 = vector.shape_cast %25 : vector<1x256xi1> to vector<1x256xi1>
    %93 = vector.broadcast %92 : vector<1x256xi1> to vector<8x256xi1>
    %94 = vector.broadcast %cst_40 : f32 to vector<8x256xf32>
    %95 = arith.select %93, %91, %94 : vector<8x256xi1>, vector<8x256xf32>
    %c255_i32_41 = arith.constant 255 : i32
    %96 = tpu.dynamic_rotate %90 by %c255_i32_41 dim 1 : vector<8x256xf32>, i32 -> vector<8x256xf32>
    %cst_42 = arith.constant 0.000000e+00 : f32
    %97 = vector.shape_cast %34 : vector<1x256xi1> to vector<1x256xi1>
    %98 = vector.broadcast %97 : vector<1x256xi1> to vector<8x256xi1>
    %99 = vector.broadcast %cst_42 : f32 to vector<8x256xf32>
    %100 = arith.select %98, %96, %99 : vector<8x256xi1>, vector<8x256xf32>
    %101 = tpu.concatenate %95, %90, %100 in 0 : vector<8x256xf32>, vector<8x256xf32>, vector<8x256xf32> -> vector<24x256xf32>
    %102 = arith.truncf %101 : vector<24x256xf32> to vector<24x256xbf16>
    %c0_43 = arith.constant 0 : index
    %c0_44 = arith.constant 0 : index
    %103 = vector.load %arg5[%c0_43, %c0_44] : memref<8x24xbf16, #tpu.memory_space<vmem>>, vector<8x24xbf16>
    %cst_45 = arith.constant dense<0.000000e+00> : vector<8x256xf32>
    %104 = tpu.matmul %103, %102, %cst_45 {dimension_numbers = #tpu.dot_dimension_numbers<[1], [0], [0], [1], [0, 0, 1, 1], [], []>} : vector<8x24xbf16>, vector<24x256xbf16>, vector<8x256xf32> -> vector<8x256xf32>
    %c0_46 = arith.constant 0 : index
    %c0_47 = arith.constant 0 : index
    %105 = vector.load %arg6[%c0_46, %c0_47] : memref<8x1xf32, #tpu.memory_space<vmem>>, vector<8x1xf32>
    %106 = vector.broadcast %105 : vector<8x1xf32> to vector<8x256xf32>
    %107 = arith.addf %104, %106 : vector<8x256xf32>
    %cst_48 = arith.constant 0.000000e+00 : f32
    %108 = vector.broadcast %cst_48 : f32 to vector<8x256xf32>
    %109 = arith.cmpf ogt, %107, %108 : vector<8x256xf32>
    %cst_49 = arith.constant 0.000000e+00 : f32
    %110 = vector.broadcast %cst_49 : f32 to vector<8x256xf32>
    %111 = arith.minimumf %107, %110 : vector<8x256xf32>
    %112 = math.exp %111 : vector<8x256xf32>
    %cst_50 = arith.constant 1.000000e+00 : f32
    %113 = vector.broadcast %cst_50 : f32 to vector<8x256xf32>
    %114 = arith.subf %112, %113 : vector<8x256xf32>
    %cst_51 = arith.constant 1.67326319 : f32
    %115 = vector.broadcast %cst_51 : f32 to vector<8x256xf32>
    %116 = arith.mulf %115, %114 : vector<8x256xf32>
    %117 = arith.select %109, %107, %116 : vector<8x256xi1>, vector<8x256xf32>
    %cst_52 = arith.constant 1.05070102 : f32
    %118 = vector.broadcast %cst_52 : f32 to vector<8x256xf32>
    %119 = arith.mulf %118, %117 : vector<8x256xf32>
    %cst_53 = arith.constant dense<0.000000e+00> : vector<8x2xf32>
    %120 = tpu.matmul %119, %50, %cst_53 {dimension_numbers = #tpu.dot_dimension_numbers<[1], [1], [0], [0], [0, 0, 1, 0], [], []>} : vector<8x256xf32>, vector<2x256xf32>, vector<8x2xf32> -> vector<8x2xf32>
    %c0_54 = arith.constant 0 : index
    %c0_55 = arith.constant 0 : index
    %121 = vector.load %arg7[%c0_54, %c0_55] : memref<2x8xf32, #tpu.memory_space<vmem>>, vector<2x8xf32>
    %cst_56 = arith.constant dense<0.000000e+00> : vector<2x2xf32>
    %122 = tpu.matmul %121, %120, %cst_56 {dimension_numbers = #tpu.dot_dimension_numbers<[1], [0], [0], [1], [0, 0, 1, 1], [], []>} : vector<2x8xf32>, vector<8x2xf32>, vector<2x2xf32> -> vector<2x2xf32>
    %cst_57 = arith.constant 0.000000e+00 : f32
    %123 = vector.broadcast %cst_57 : f32 to vector<2x2xf32>
    %124 = arith.maximumf %122, %123 : vector<2x2xf32>
    %c0_58 = arith.constant 0 : index
    %c0_59 = arith.constant 0 : index
    %125 = vector.load %arg8[%c0_58, %c0_59] : memref<8x2xf32, #tpu.memory_space<vmem>>, vector<8x2xf32>
    %cst_60 = arith.constant dense<0.000000e+00> : vector<8x2xf32>
    %126 = tpu.matmul %125, %124, %cst_60 {dimension_numbers = #tpu.dot_dimension_numbers<[1], [0], [0], [1], [0, 0, 1, 1], [], []>} : vector<8x2xf32>, vector<2x2xf32>, vector<8x2xf32> -> vector<8x2xf32>
    %127 = arith.negf %126 : vector<8x2xf32>
    %128 = math.exp %127 : vector<8x2xf32>
    %cst_61 = arith.constant 1.000000e+00 : f32
    %129 = vector.broadcast %cst_61 : f32 to vector<8x2xf32>
    %130 = arith.addf %129, %128 : vector<8x2xf32>
    %131 = arith.divf %129, %130 : vector<8x2xf32>
    %cst_62 = arith.constant dense<0.000000e+00> : vector<8x256xf32>
    %132 = tpu.matmul %131, %48, %cst_62 {dimension_numbers = #tpu.dot_dimension_numbers<[1], [0], [0], [1], [0, 0, 1, 1], [], []>} : vector<8x2xf32>, vector<2x256xf32>, vector<8x256xf32> -> vector<8x256xf32>
    %133 = arith.mulf %119, %132 : vector<8x256xf32>
    %c1_i32_63 = arith.constant 1 : i32
    %134 = tpu.dynamic_rotate %133 by %c1_i32_63 dim 1 : vector<8x256xf32>, i32 -> vector<8x256xf32>
    %cst_64 = arith.constant 0.000000e+00 : f32
    %135 = vector.shape_cast %25 : vector<1x256xi1> to vector<1x256xi1>
    %136 = vector.broadcast %135 : vector<1x256xi1> to vector<8x256xi1>
    %137 = vector.broadcast %cst_64 : f32 to vector<8x256xf32>
    %138 = arith.select %136, %134, %137 : vector<8x256xi1>, vector<8x256xf32>
    %c255_i32_65 = arith.constant 255 : i32
    %139 = tpu.dynamic_rotate %133 by %c255_i32_65 dim 1 : vector<8x256xf32>, i32 -> vector<8x256xf32>
    %cst_66 = arith.constant 0.000000e+00 : f32
    %140 = vector.shape_cast %34 : vector<1x256xi1> to vector<1x256xi1>
    %141 = vector.broadcast %140 : vector<1x256xi1> to vector<8x256xi1>
    %142 = vector.broadcast %cst_66 : f32 to vector<8x256xf32>
    %143 = arith.select %141, %139, %142 : vector<8x256xi1>, vector<8x256xf32>
    %144 = tpu.concatenate %138, %133, %143 in 0 : vector<8x256xf32>, vector<8x256xf32>, vector<8x256xf32> -> vector<24x256xf32>
    %145 = arith.truncf %144 : vector<24x256xf32> to vector<24x256xbf16>
    %c0_67 = arith.constant 0 : index
    %c0_68 = arith.constant 0 : index
    %146 = vector.load %arg9[%c0_67, %c0_68] : memref<16x24xbf16, #tpu.memory_space<vmem>>, vector<16x24xbf16>
    %cst_69 = arith.constant dense<0.000000e+00> : vector<16x256xf32>
    %147 = tpu.matmul %146, %145, %cst_69 {dimension_numbers = #tpu.dot_dimension_numbers<[1], [0], [0], [1], [0, 0, 1, 1], [], []>} : vector<16x24xbf16>, vector<24x256xbf16>, vector<16x256xf32> -> vector<16x256xf32>
    %c0_70 = arith.constant 0 : index
    %c0_71 = arith.constant 0 : index
    %148 = vector.load %arg10[%c0_70, %c0_71] : memref<16x1xf32, #tpu.memory_space<vmem>>, vector<16x1xf32>
    %149 = vector.broadcast %148 : vector<16x1xf32> to vector<16x256xf32>
    %150 = arith.addf %147, %149 : vector<16x256xf32>
    %cst_72 = arith.constant 0.000000e+00 : f32
    %151 = vector.broadcast %cst_72 : f32 to vector<16x256xf32>
    %152 = arith.cmpf ogt, %150, %151 : vector<16x256xf32>
    %cst_73 = arith.constant 0.000000e+00 : f32
    %153 = vector.broadcast %cst_73 : f32 to vector<16x256xf32>
    %154 = arith.minimumf %150, %153 : vector<16x256xf32>
    %155 = math.exp %154 : vector<16x256xf32>
    %cst_74 = arith.constant 1.000000e+00 : f32
    %156 = vector.broadcast %cst_74 : f32 to vector<16x256xf32>
    %157 = arith.subf %155, %156 : vector<16x256xf32>
    %cst_75 = arith.constant 1.67326319 : f32
    %158 = vector.broadcast %cst_75 : f32 to vector<16x256xf32>
    %159 = arith.mulf %158, %157 : vector<16x256xf32>
    %160 = arith.select %152, %150, %159 : vector<16x256xi1>, vector<16x256xf32>
    %cst_76 = arith.constant 1.05070102 : f32
    %161 = vector.broadcast %cst_76 : f32 to vector<16x256xf32>
    %162 = arith.mulf %161, %160 : vector<16x256xf32>
    %cst_77 = arith.constant dense<0.000000e+00> : vector<16x2xf32>
    %163 = tpu.matmul %162, %50, %cst_77 {dimension_numbers = #tpu.dot_dimension_numbers<[1], [1], [0], [0], [0, 0, 1, 0], [], []>} : vector<16x256xf32>, vector<2x256xf32>, vector<16x2xf32> -> vector<16x2xf32>
    %c0_78 = arith.constant 0 : index
    %c0_79 = arith.constant 0 : index
    %164 = vector.load %arg11[%c0_78, %c0_79] : memref<4x16xf32, #tpu.memory_space<vmem>>, vector<4x16xf32>
    %cst_80 = arith.constant dense<0.000000e+00> : vector<4x2xf32>
    %165 = tpu.matmul %164, %163, %cst_80 {dimension_numbers = #tpu.dot_dimension_numbers<[1], [0], [0], [1], [0, 0, 1, 1], [], []>} : vector<4x16xf32>, vector<16x2xf32>, vector<4x2xf32> -> vector<4x2xf32>
    %cst_81 = arith.constant 0.000000e+00 : f32
    %166 = vector.broadcast %cst_81 : f32 to vector<4x2xf32>
    %167 = arith.maximumf %165, %166 : vector<4x2xf32>
    %c0_82 = arith.constant 0 : index
    %c0_83 = arith.constant 0 : index
    %168 = vector.load %arg12[%c0_82, %c0_83] : memref<16x4xf32, #tpu.memory_space<vmem>>, vector<16x4xf32>
    %cst_84 = arith.constant dense<0.000000e+00> : vector<16x2xf32>
    %169 = tpu.matmul %168, %167, %cst_84 {dimension_numbers = #tpu.dot_dimension_numbers<[1], [0], [0], [1], [0, 0, 1, 1], [], []>} : vector<16x4xf32>, vector<4x2xf32>, vector<16x2xf32> -> vector<16x2xf32>
    %170 = arith.negf %169 : vector<16x2xf32>
    %171 = math.exp %170 : vector<16x2xf32>
    %cst_85 = arith.constant 1.000000e+00 : f32
    %172 = vector.broadcast %cst_85 : f32 to vector<16x2xf32>
    %173 = arith.addf %172, %171 : vector<16x2xf32>
    %174 = arith.divf %172, %173 : vector<16x2xf32>
    %cst_86 = arith.constant dense<0.000000e+00> : vector<16x256xf32>
    %175 = tpu.matmul %174, %48, %cst_86 {dimension_numbers = #tpu.dot_dimension_numbers<[1], [0], [0], [1], [0, 0, 1, 1], [], []>} : vector<16x2xf32>, vector<2x256xf32>, vector<16x256xf32> -> vector<16x256xf32>
    %176 = arith.mulf %162, %175 : vector<16x256xf32>
    %c1_i32_87 = arith.constant 1 : i32
    %177 = tpu.dynamic_rotate %176 by %c1_i32_87 dim 1 : vector<16x256xf32>, i32 -> vector<16x256xf32>
    %cst_88 = arith.constant 0.000000e+00 : f32
    %178 = vector.shape_cast %25 : vector<1x256xi1> to vector<1x256xi1>
    %179 = vector.broadcast %178 : vector<1x256xi1> to vector<16x256xi1>
    %180 = vector.broadcast %cst_88 : f32 to vector<16x256xf32>
    %181 = arith.select %179, %177, %180 : vector<16x256xi1>, vector<16x256xf32>
    %c255_i32_89 = arith.constant 255 : i32
    %182 = tpu.dynamic_rotate %176 by %c255_i32_89 dim 1 : vector<16x256xf32>, i32 -> vector<16x256xf32>
    %cst_90 = arith.constant 0.000000e+00 : f32
    %183 = vector.shape_cast %34 : vector<1x256xi1> to vector<1x256xi1>
    %184 = vector.broadcast %183 : vector<1x256xi1> to vector<16x256xi1>
    %185 = vector.broadcast %cst_90 : f32 to vector<16x256xf32>
    %186 = arith.select %184, %182, %185 : vector<16x256xi1>, vector<16x256xf32>
    %187 = tpu.concatenate %181, %176, %186 in 0 : vector<16x256xf32>, vector<16x256xf32>, vector<16x256xf32> -> vector<48x256xf32>
    %188 = arith.truncf %187 : vector<48x256xf32> to vector<48x256xbf16>
    %c0_91 = arith.constant 0 : index
    %c0_92 = arith.constant 0 : index
    %189 = vector.load %arg13[%c0_91, %c0_92] : memref<16x48xbf16, #tpu.memory_space<vmem>>, vector<16x48xbf16>
    %cst_93 = arith.constant dense<0.000000e+00> : vector<16x256xf32>
    %190 = tpu.matmul %189, %188, %cst_93 {dimension_numbers = #tpu.dot_dimension_numbers<[1], [0], [0], [1], [0, 0, 1, 1], [], []>} : vector<16x48xbf16>, vector<48x256xbf16>, vector<16x256xf32> -> vector<16x256xf32>
    %c0_94 = arith.constant 0 : index
    %c0_95 = arith.constant 0 : index
    %191 = vector.load %arg14[%c0_94, %c0_95] : memref<16x1xf32, #tpu.memory_space<vmem>>, vector<16x1xf32>
    %192 = vector.broadcast %191 : vector<16x1xf32> to vector<16x256xf32>
    %193 = arith.addf %190, %192 : vector<16x256xf32>
    %cst_96 = arith.constant 0.000000e+00 : f32
    %194 = vector.broadcast %cst_96 : f32 to vector<16x256xf32>
    %195 = arith.cmpf ogt, %193, %194 : vector<16x256xf32>
    %cst_97 = arith.constant 0.000000e+00 : f32
    %196 = vector.broadcast %cst_97 : f32 to vector<16x256xf32>
    %197 = arith.minimumf %193, %196 : vector<16x256xf32>
    %198 = math.exp %197 : vector<16x256xf32>
    %cst_98 = arith.constant 1.000000e+00 : f32
    %199 = vector.broadcast %cst_98 : f32 to vector<16x256xf32>
    %200 = arith.subf %198, %199 : vector<16x256xf32>
    %cst_99 = arith.constant 1.67326319 : f32
    %201 = vector.broadcast %cst_99 : f32 to vector<16x256xf32>
    %202 = arith.mulf %201, %200 : vector<16x256xf32>
    %203 = arith.select %195, %193, %202 : vector<16x256xi1>, vector<16x256xf32>
    %cst_100 = arith.constant 1.05070102 : f32
    %204 = vector.broadcast %cst_100 : f32 to vector<16x256xf32>
    %205 = arith.mulf %204, %203 : vector<16x256xf32>
    %cst_101 = arith.constant dense<0.000000e+00> : vector<16x2xf32>
    %206 = tpu.matmul %205, %50, %cst_101 {dimension_numbers = #tpu.dot_dimension_numbers<[1], [1], [0], [0], [0, 0, 1, 0], [], []>} : vector<16x256xf32>, vector<2x256xf32>, vector<16x2xf32> -> vector<16x2xf32>
    %c0_102 = arith.constant 0 : index
    %c0_103 = arith.constant 0 : index
    %207 = vector.load %arg15[%c0_102, %c0_103] : memref<4x16xf32, #tpu.memory_space<vmem>>, vector<4x16xf32>
    %cst_104 = arith.constant dense<0.000000e+00> : vector<4x2xf32>
    %208 = tpu.matmul %207, %206, %cst_104 {dimension_numbers = #tpu.dot_dimension_numbers<[1], [0], [0], [1], [0, 0, 1, 1], [], []>} : vector<4x16xf32>, vector<16x2xf32>, vector<4x2xf32> -> vector<4x2xf32>
    %cst_105 = arith.constant 0.000000e+00 : f32
    %209 = vector.broadcast %cst_105 : f32 to vector<4x2xf32>
    %210 = arith.maximumf %208, %209 : vector<4x2xf32>
    %c0_106 = arith.constant 0 : index
    %c0_107 = arith.constant 0 : index
    %211 = vector.load %arg16[%c0_106, %c0_107] : memref<16x4xf32, #tpu.memory_space<vmem>>, vector<16x4xf32>
    %cst_108 = arith.constant dense<0.000000e+00> : vector<16x2xf32>
    %212 = tpu.matmul %211, %210, %cst_108 {dimension_numbers = #tpu.dot_dimension_numbers<[1], [0], [0], [1], [0, 0, 1, 1], [], []>} : vector<16x4xf32>, vector<4x2xf32>, vector<16x2xf32> -> vector<16x2xf32>
    %213 = arith.negf %212 : vector<16x2xf32>
    %214 = math.exp %213 : vector<16x2xf32>
    %cst_109 = arith.constant 1.000000e+00 : f32
    %215 = vector.broadcast %cst_109 : f32 to vector<16x2xf32>
    %216 = arith.addf %215, %214 : vector<16x2xf32>
    %217 = arith.divf %215, %216 : vector<16x2xf32>
    %cst_110 = arith.constant dense<0.000000e+00> : vector<16x256xf32>
    %218 = tpu.matmul %217, %48, %cst_110 {dimension_numbers = #tpu.dot_dimension_numbers<[1], [0], [0], [1], [0, 0, 1, 1], [], []>} : vector<16x2xf32>, vector<2x256xf32>, vector<16x256xf32> -> vector<16x256xf32>
    %219 = arith.mulf %205, %218 : vector<16x256xf32>
    %cst_111 = arith.constant dense<0.000000e+00> : vector<2x16xf32>
    %220 = tpu.matmul %50, %219, %cst_111 {dimension_numbers = #tpu.dot_dimension_numbers<[1], [1], [0], [0], [0, 0, 1, 0], [], []>} : vector<2x256xf32>, vector<16x256xf32>, vector<2x16xf32> -> vector<2x16xf32>
    %c0_112 = arith.constant 0 : index
    %c0_113 = arith.constant 0 : index
    %221 = vector.load %arg17[%c0_112, %c0_113] : memref<2x16xf32, #tpu.memory_space<vmem>>, vector<2x16xf32>
    tpu.vector_store %arg17[%c0_112, %c0_113], %220 {strides = array<i32>} : memref<2x16xf32, #tpu.memory_space<vmem>>, vector<2x16xf32>,
    return
  }
}

</mosaic_0001>

<llo_original>
// kernel: cdcnn_forward.1
$region0: #{cdcnn_forward.1}
  #allocation0 [shape = 'u32[]', space=smem, size = 0x4, offset = 0x4, fixed_abs, tag = 'smem constant byte address 0x4 - core index']
  #allocation1 [shape = 'u32[72,128]{1,0:T(1,128)}', space=vmem, size = 0x9000, scoped, tag = 'internal scratch']
  %s0 = inlined_call_operand.vmem [shape: f32[1,256], index: 0, kind: input, shape index: {}]
  %s1 = inlined_call_operand.vmem [shape: bf16[8,3], index: 1, kind: input, shape index: {}]
  %s2 = inlined_call_operand.vmem [shape: f32[8,1], index: 2, kind: input, shape index: {}]
  %s3 = inlined_call_operand.vmem [shape: f32[2,8], index: 3, kind: input, shape index: {}]
  %s4 = inlined_call_operand.vmem [shape: f32[8,2], index: 4, kind: input, shape index: {}]
  %s5 = inlined_call_operand.vmem [shape: bf16[8,24], index: 5, kind: input, shape index: {}]
  %s6 = inlined_call_operand.vmem [shape: f32[8,1], index: 6, kind: input, shape index: {}]
  %s7 = inlined_call_operand.vmem [shape: f32[2,8], index: 7, kind: input, shape index: {}]
  %s8 = inlined_call_operand.vmem [shape: f32[8,2], index: 8, kind: input, shape index: {}]
  %s9 = inlined_call_operand.vmem [shape: bf16[16,24], index: 9, kind: input, shape index: {}]
  %s10 = inlined_call_operand.vmem [shape: f32[16,1], index: 10, kind: input, shape index: {}]
  %s11 = inlined_call_operand.vmem [shape: f32[4,16], index: 11, kind: input, shape index: {}]
  %s12 = inlined_call_operand.vmem [shape: f32[16,4], index: 12, kind: input, shape index: {}]
  %s13 = inlined_call_operand.vmem [shape: bf16[16,48], index: 13, kind: input, shape index: {}]
  %s14 = inlined_call_operand.vmem [shape: f32[16,1], index: 14, kind: input, shape index: {}]
  %s15 = inlined_call_operand.vmem [shape: f32[4,16], index: 15, kind: input, shape index: {}]
  %s16 = inlined_call_operand.vmem [shape: f32[16,4], index: 16, kind: input, shape index: {}]
  %s17 = inlined_call_operand.hbm [shape: f32[2,16], index: 17, kind: output, shape index: {}]
  %s18 = sld [smem:[#allocation0]]
  $region78: #{cdcnn_forward.1} parent=0
    _
  %s20 = ssub.s32 1, %s18
  %s21 = scalar_select 0, %s20, %s18
  $region1: #{cdcnn_forward.1} parent=0
    #allocation2 [shape = 'u8[1024]{0}', space=vmem, size = 0x400, scoped, tag = 'output window, operand 0, single buffered']
    #allocation3 [shape = 's32[1]{0}', space=sflag, size = 0x4, scoped, tag = 'scoped memory for cdcnn_forward.1']
    %22 = vsyncpa [#allocation3], 0
    // Predicated region
    $region2: #{cdcnn_forward.1} parent=1 // pred_check
      _
    $region3: #{cdcnn_forward.1} parent=1 // pred_check_branch
      %24 = sbr.rel (0) target = $region5
    $region4: #{cdcnn_forward.1} parent=1 // pred_region
      _
    $region5: #{cdcnn_forward.1} parent=1 // pred_fallthru
      _
    // Predicated region
    $region6: #{cdcnn_forward.1} parent=1 // pred_check
      _
    $region7: #{cdcnn_forward.1} parent=1 // pred_check_branch
      %26 = sbr.rel (0) target = $region9
    $region8: #{cdcnn_forward.1} parent=1 // pred_region
      _
    $region9: #{cdcnn_forward.1} parent=1 // pred_fallthru
      _
    // Predicated region
    $region10: #{cdcnn_forward.1} parent=1 // pred_check
      _
    $region11: #{cdcnn_forward.1} parent=1 // pred_check_branch
      %28 = sbr.rel (0) target = $region13
    $region12: #{cdcnn_forward.1} parent=1 // pred_region
      _
    $region13: #{cdcnn_forward.1} parent=1 // pred_fallthru
      _
    // Predicated region
    $region14: #{cdcnn_forward.1} parent=1 // pred_check
      _
    $region15: #{cdcnn_forward.1} parent=1 // pred_check_branch
      %30 = sbr.rel (0) target = $region17
    $region16: #{cdcnn_forward.1} parent=1 // pred_region
      _
    $region17: #{cdcnn_forward.1} parent=1 // pred_fallthru
      _
    // Predicated region
    $region18: #{cdcnn_forward.1} parent=1 // pred_check
      _
    $region19: #{cdcnn_forward.1} parent=1 // pred_check_branch
      %32 = sbr.rel (0) target = $region21
    $region20: #{cdcnn_forward.1} parent=1 // pred_region
      _
    $region21: #{cdcnn_forward.1} parent=1 // pred_fallthru
      _
    // Predicated region
    $region22: #{cdcnn_forward.1} parent=1 // pred_check
      _
    $region23: #{cdcnn_forward.1} parent=1 // pred_check_branch
      %34 = sbr.rel (0) target = $region25
    $region24: #{cdcnn_forward.1} parent=1 // pred_region
      _
    $region25: #{cdcnn_forward.1} parent=1 // pred_fallthru
      _
    // Predicated region
    $region26: #{cdcnn_forward.1} parent=1 // pred_check
      _
    $region27: #{cdcnn_forward.1} parent=1 // pred_check_branch
      %36 = sbr.rel (0) target = $region29
    $region28: #{cdcnn_forward.1} parent=1 // pred_region
      _
    $region29: #{cdcnn_forward.1} parent=1 // pred_fallthru
      _
    // Predicated region
    $region30: #{cdcnn_forward.1} parent=1 // pred_check
      _
    $region31: #{cdcnn_forward.1} parent=1 // pred_check_branch
      %38 = sbr.rel (0) target = $region33
    $region32: #{cdcnn_forward.1} parent=1 // pred_region
      _
    $region33: #{cdcnn_forward.1} parent=1 // pred_fallthru
      _
    // Predicated region
    $region34: #{cdcnn_forward.1} parent=1 // pred_check
      _
    $region35: #{cdcnn_forward.1} parent=1 // pred_check_branch
      %40 = sbr.rel (0) target = $region37
    $region36: #{cdcnn_forward.1} parent=1 // pred_region
      _
    $region37: #{cdcnn_forward.1} parent=1 // pred_fallthru
      _
    // Predicated region
    $region38: #{cdcnn_forward.1} parent=1 // pred_check
      _
    $region39: #{cdcnn_forward.1} parent=1 // pred_check_branch
      %42 = sbr.rel (0) target = $region41
    $region40: #{cdcnn_forward.1} parent=1 // pred_region
      _
    $region41: #{cdcnn_forward.1} parent=1 // pred_fallthru
      _
    // Predicated region
    $region42: #{cdcnn_forward.1} parent=1 // pred_check
      _
    $region43: #{cdcnn_forward.1} parent=1 // pred_check_branch
      %44 = sbr.rel (0) target = $region45
    $region44: #{cdcnn_forward.1} parent=1 // pred_region
      _
    $region45: #{cdcnn_forward.1} parent=1 // pred_fallthru
      _
    // Predicated region
    $region46: #{cdcnn_forward.1} parent=1 // pred_check
      _
    $region47: #{cdcnn_forward.1} parent=1 // pred_check_branch
      %46 = sbr.rel (0) target = $region49
    $region48: #{cdcnn_forward.1} parent=1 // pred_region
      _
    $region49: #{cdcnn_forward.1} parent=1 // pred_fallthru
      _
    // Predicated region
    $region50: #{cdcnn_forward.1} parent=1 // pred_check
      _
    $region51: #{cdcnn_forward.1} parent=1 // pred_check_branch
      %48 = sbr.rel (0) target = $region53
    $region52: #{cdcnn_forward.1} parent=1 // pred_region
      _
    $region53: #{cdcnn_forward.1} parent=1 // pred_fallthru
      _
    // Predicated region
    $region54: #{cdcnn_forward.1} parent=1 // pred_check
      _
    $region55: #{cdcnn_forward.1} parent=1 // pred_check_branch
      %50 = sbr.rel (0) target = $region57
    $region56: #{cdcnn_forward.1} parent=1 // pred_region
      _
    $region57: #{cdcnn_forward.1} parent=1 // pred_fallthru
      _
    // Predicated region
    $region58: #{cdcnn_forward.1} parent=1 // pred_check
      _
    $region59: #{cdcnn_forward.1} parent=1 // pred_check_branch
      %52 = sbr.rel (0) target = $region61
    $region60: #{cdcnn_forward.1} parent=1 // pred_region
      _
    $region61: #{cdcnn_forward.1} parent=1 // pred_fallthru
      _
    // Predicated region
    $region62: #{cdcnn_forward.1} parent=1 // pred_check
      _
    $region63: #{cdcnn_forward.1} parent=1 // pred_check_branch
      %54 = sbr.rel (0) target = $region65
    $region64: #{cdcnn_forward.1} parent=1 // pred_region
      _
    $region65: #{cdcnn_forward.1} parent=1 // pred_fallthru
      _
    // Predicated region
    $region66: #{cdcnn_forward.1} parent=1 // pred_check
      _
    $region67: #{cdcnn_forward.1} parent=1 // pred_check_branch
      %56 = sbr.rel (0) target = $region69
    $region68: #{cdcnn_forward.1} parent=1 // pred_region
      _
    $region69: #{cdcnn_forward.1} parent=1 // pred_fallthru
      _
    %v58 = vlaneseq
    %v59 = vand.u32 %v58, 127
    %v60 = vadd.s32 %v59, 128
    %vm61 = vcmp.lt.s32.totalorder %v59, 0
    %v62 = vsub.s32 0, %v59
    %v63 = vsel %vm61, %v62, %v59
    %v64 = vshrl.u32 %v63, 7
    %v65 = vand.u32 %v63, 127
    %v66 = vsub.s32 0, %v65
    %v67 = vsel %vm61, %v66, %v65
    %vm68 = vcmp.lt.s32.totalorder %v60, 0
    %v69 = vsub.s32 0, %v60
    %v70 = vsel %vm68, %v69, %v60
    %v71 = vshrl.u32 %v70, 7
    %v72 = vand.u32 %v70, 127
    %v73 = vsub.s32 0, %v72
    %v74 = vsel %vm68, %v73, %v72
    %vm75 = vcmp.ne.s32.totalorder %v67, 0
    %vm76 = vcmp.ne.s32.totalorder %v74, 0
    %vm77 = vcmp.lt.s32.totalorder %v67, 0
    %vm78 = vcmp.lt.s32.totalorder %v74, 0
    %vm79 = vmand %vm77, %vm75
    %vm80 = vmand %vm78, %vm76
    %v81 = vadd.s32 %v67, 128
    %v82 = vadd.s32 %v74, 128
    %v83 = vsel %vm79, %v81, %v67
    %v84 = vsel %vm80, %v82, %v74
    %v85 = vadd.s32 %v83, 4294967295
    %v86 = vadd.s32 %v84, 4294967295
    %vm87 = vcmp.ge.s32.totalorder %v85, 0
    %vm88 = vcmp.ge.s32.totalorder %v86, 0
    %vm89 = vcmp.lt.s32.totalorder %v85, 128
    %vm90 = vcmp.lt.s32.totalorder %v86, 128
    %vm91 = vmand %vm87, %vm89
    %vm92 = vmand %vm88, %vm90
    %v93 = vadd.s32 %v83, 1
    %v94 = vadd.s32 %v84, 1
    %vm95 = vcmp.ge.s32.totalorder %v93, 0
    %vm96 = vcmp.ge.s32.totalorder %v94, 0
    %vm97 = vcmp.lt.s32.totalorder %v93, 128
    %vm98 = vcmp.lt.s32.totalorder %v94, 128
    %vm99 = vmand %vm95, %vm97
    %vm100 = vmand %vm96, %vm98
    %v101 = vlaneseq
    %v102 = vshrl.u32 %v101, 7
    %v103 = vmul.u32 %v102, 128
    %vm104 = vcmp.ge.s32.totalorder %v59, %v103
    %vm105 = vcmp.ge.s32.totalorder %v60, %v103
    %v106 = vadd.s32 %v102, 1
    %v107 = vmul.u32 %v106, 128
    %vm108 = vcmp.lt.s32.totalorder %v59, %v107
    %vm109 = vcmp.lt.s32.totalorder %v60, %v107
    %vm110 = vmand %vm104, %vm108
    %vm111 = vmand %vm105, %vm109
    %v112 = vsel %vm110, 1.0, 0.0
    %v113 = vsel %vm111, 1.0, 0.0
    %v114 = vmul.f32 %v112, 0.0078125
    %v115 = vmul.f32 %v113, 0.0078125
    %v116 = vld [vmem:[%s0] sm:$0x3]
    %v118 = vperm.slane %v116, 0
    %v119 = vperm.slane %v116, 1
    %122 = vrot.lane.b32.xlu0 %v118, 1
    %v123 = vpop.permute.xlu0 %122
    %124 = vrot.lane.b32.xlu0 %v119, 1
    %v125 = vpop.permute.xlu0 %124
    %vm126 = vcmp.lt.s32.totalorder %v59, 1
    %v127 = vsel %vm126, %v123, %v125
    %v128 = vsel %vm126, %v125, %v123
    %v129 = vsel %vm91, %v128, 0.0
    %v130 = vsel %vm92, %v127, 0.0
    %131 = vrot.lane.b32.xlu0 %v118, 127
    %v132 = vpop.permute.xlu0 %131
    %133 = vrot.lane.b32.xlu0 %v119, 127
    %v134 = vpop.permute.xlu0 %133
    %vm135 = vcmp.lt.s32.totalorder %v59, 127
    %v136 = vsel %vm135, %v132, %v134
    %v137 = vsel %vm135, %v134, %v132
    %v138 = vsel %vm99, %v136, 0.0
    %v139 = vsel %vm100, %v137, 0.0
    %v142 = vrot.slane %v138, 6
    %v143 = vrot.slane %v139, 6
    %vm146 = vcmask 1040384
    %v147 = vsel %vm146, %v129, %v118
    %v148 = vsel %vm146, %v130, %v119
    %vm149 = vcmask 1041408
    %v150 = vsel %vm149, %v147, %v142
    %v151 = vsel %vm149, %v148, %v143
    %v152 = vpack.c.bf16 %v150, %v150
    %v153 = vpack.c.bf16 %v151, %v151
    %v154 = vld [vmem:[%s1] sm:$0xf]
    %v155 = vld [vmem:[%s2] sm:$0xff]
    %157 = vset.pattern.permute.xlu0 0
    %158 = vperm.xlu0 %157, %v155
    %v159 = vpop.permute.xlu0 %158
    %vm161 = vcmask 23552
    %v163 = vsel %vm161, %v154, 0
    %v165 = vsel %vm146, 4294967295, 65535
    %v166 = vsel %vm149, %v165, 0
    %v168 = vand.u32 %v152, %v166
    %v171 = vand.u32 %v153, %v166
    %173 = vmatpush.bf16.msra.mxu0 0
    %174 = vmatpush.bf16.msra.mxu0 0
    %175 = vmatpush.bf16.msra.mxu0 0
    %176 = vmatpush.bf16.msra.mxu0 0
    %177 = vmatpush.bf16.msra.mxu0 0
    %178 = vmatpush.bf16.msra.mxu0 0
    %179 = vmatpush.bf16.msra.mxu0 0
    %180 = vmatpush.bf16.msra.mxu0 %v168
    %181 = vmatmul.bf16.gmra.mxu0 %v163
    %v182 = vpop.f32.mrf.mxu0
    %v183 = vadd.f32 %v159, %v182
    %v184 = vpop.f32.mrf.mxu0
    %185 = vdwg.mxu0
    %186 = vmatpush.bf16.msra.mxu0 0
    %187 = vmatpush.bf16.msra.mxu0 0
    %188 = vmatpush.bf16.msra.mxu0 0
    %189 = vmatpush.bf16.msra.mxu0 0
    %190 = vmatpush.bf16.msra.mxu0 0
    %191 = vmatpush.bf16.msra.mxu0 0
    %192 = vmatpush.bf16.msra.mxu0 0
    %193 = vmatpush.bf16.msra.mxu0 %v171
    %194 = vmatmul.bf16.gmra.mxu0 %v163
    %v195 = vpop.f32.mrf.mxu0
    %v196 = vadd.f32 %v159, %v195
    %v197 = vpop.f32.mrf.mxu0
    %198 = vdwg.mxu0
    %vm199 = vcmp.gt.f32.partialorder %v183, 0.0
    %vm200 = vcmp.gt.f32.partialorder %v196, 0.0
    %v201 = vmin.f32 %v183, 0.0
    %v202 = vmin.f32 %v196, 0.0
    %v203 = vmul.f32 %v201, 1.442695
    %v204 = vpow.pop %v203
    %v205 = vmul.f32 %v202, 1.442695
    %v206 = vpow.pop %v205
    %v207 = vsub.f32 %v204, 1.0
    %v208 = vsub.f32 %v206, 1.0
    %v209 = vmul.f32 %v207, 1.6732632
    %v210 = vmul.f32 %v208, 1.6732632
    %v211 = vsel %vm199, %v183, %v209
    %v212 = vsel %vm200, %v196, %v210
    %v213 = vmul.f32 %v211, 1.050701
    %v214 = vmul.f32 %v212, 1.050701
    %215 = vmatpush.xpose.msra.mxu0 0.0
    %216 = vmatpush.xpose.msra.mxu0 0.0
    %217 = vmatpush.xpose.msra.mxu0 0.0
    %218 = vmatpush.xpose.msra.mxu0 0.0
    %219 = vmatpush.xpose.msra.mxu0 0.0
    %220 = vmatpush.xpose.msra.mxu0 0.0
    %221 = vmatpush.xpose.msra.mxu0 0.0
    %222 = vmatpush.xpose.msra.mxu0 0.0
    %223 = vmatpush.xpose.msra.mxu0 0.0
    %224 = vmatpush.xpose.msra.mxu0 0.0
    %225 = vmatpush.xpose.msra.mxu0 0.0
    %226 = vmatpush.xpose.msra.mxu0 0.0
    %227 = vmatpush.xpose.msra.mxu0 0.0
    %228 = vmatpush.xpose.msra.mxu0 0.0
    %229 = vmatpush.xpose.msra.mxu0 0.0
    %230 = vmatpush.xpose.msra.mxu0 %v114
    %231 = vmatmul.f32.gmra.mxu0 %v213
    %v232 = vpop.f32.mrf.mxu0
    %v233 = vadd.f32 0.0, %v232
    %234 = vdwg.mxu0
    %235 = vmatpush.xpose.msra.mxu0 0.0
    %236 = vmatpush.xpose.msra.mxu0 0.0
    %237 = vmatpush.xpose.msra.mxu0 0.0
    %238 = vmatpush.xpose.msra.mxu0 0.0
    %239 = vmatpush.xpose.msra.mxu0 0.0
    %240 = vmatpush.xpose.msra.mxu0 0.0
    %241 = vmatpush.xpose.msra.mxu0 0.0
    %242 = vmatpush.xpose.msra.mxu0 0.0
    %243 = vmatpush.xpose.msra.mxu0 0.0
    %244 = vmatpush.xpose.msra.mxu0 0.0
    %245 = vmatpush.xpose.msra.mxu0 0.0
    %246 = vmatpush.xpose.msra.mxu0 0.0
    %247 = vmatpush.xpose.msra.mxu0 0.0
    %248 = vmatpush.xpose.msra.mxu0 0.0
    %249 = vmatpush.xpose.msra.mxu0 0.0
    %250 = vmatpush.xpose.msra.mxu0 %v115
    %251 = vmatmul.f32.gmra.mxu0 %v214
    %v252 = vpop.f32.mrf.mxu0
    %v253 = vadd.f32 %v233, %v252
    %254 = vdwg.mxu0
    %v255 = vld [vmem:[%s3] sm:$0x3]
    %vm256 = vcmask 64512
    %v258 = vsel %vm256, %v255, 0
    %260 = vmatpush.msra.mxu0 0.0
    %261 = vmatpush.msra.mxu0 0.0
    %262 = vmatpush.msra.mxu0 0.0
    %263 = vmatpush.msra.mxu0 0.0
    %264 = vmatpush.msra.mxu0 0.0
    %265 = vmatpush.msra.mxu0 0.0
    %266 = vmatpush.msra.mxu0 0.0
    %267 = vmatpush.msra.mxu0 0.0
    %268 = vmatpush.msra.mxu0 0.0
    %269 = vmatpush.msra.mxu0 0.0
    %270 = vmatpush.msra.mxu0 0.0
    %271 = vmatpush.msra.mxu0 0.0
    %272 = vmatpush.msra.mxu0 0.0
    %273 = vmatpush.msra.mxu0 0.0
    %274 = vmatpush.msra.mxu0 0.0
    %275 = vmatpush.msra.mxu0 %v253
    %276 = vmatmul.f32.gmra.mxu0 %v258
    %v277 = vpop.f32.mrf.mxu0
    %v278 = vadd.f32 0.0, %v277
    %279 = vdwg.mxu0
    %v280 = vmax.f32 %v278, 0.0
    %v281 = vld [vmem:[%s4] sm:$0xff]
    %vm282 = vcmask 15360
    %v284 = vsel %vm282, %v281, 0
    %v287 = vsel %vm149, %v280, 0
    %289 = vmatpush.msra.mxu0 0.0
    %290 = vmatpush.msra.mxu0 0.0
    %291 = vmatpush.msra.mxu0 0.0
    %292 = vmatpush.msra.mxu0 0.0
    %293 = vmatpush.msra.mxu0 0.0
    %294 = vmatpush.msra.mxu0 0.0
    %295 = vmatpush.msra.mxu0 0.0
    %296 = vmatpush.msra.mxu0 0.0
    %297 = vmatpush.msra.mxu0 0.0
    %298 = vmatpush.msra.mxu0 0.0
    %299 = vmatpush.msra.mxu0 0.0
    %300 = vmatpush.msra.mxu0 0.0
    %301 = vmatpush.msra.mxu0 0.0
    %302 = vmatpush.msra.mxu0 0.0
    %303 = vmatpush.msra.mxu0 0.0
    %304 = vmatpush.msra.mxu0 %v287
    %305 = vmatmul.f32.gmra.mxu0 %v284
    %v306 = vpop.f32.mrf.mxu0
    %v307 = vadd.f32 0.0, %v306
    %308 = vdwg.mxu0
    %v309 = vxor.u32 %v307, 2147483648
    %v310 = vmul.f32 %v309, 1.442695
    %v311 = vpow.pop %v310
    %v312 = vadd.f32 %v311, 1.0
    %v313 = vrcp.pop %v312
    %v314 = vmul.f32 %v312, %v313
    %v315 = vsub.f32 1.0, %v314
    %v316 = vmul.f32 %v313, %v315
    %v317 = vadd.f32 %v313, %v316
    %vm318 = vweird.f32 %v312
    %vm319 = vweird.f32 %v313
    %vm320 = vmor %vm318, %vm319
    %v321 = vsel %vm320, %v313, %v317
    %v322 = vand.u32 2147483647, %v312
    %vm323 = vcmp.eq.f32.partialorder %v322, 8.507059e+37
    %v324 = vand.u32 %v312, 2147483648
    %v325 = vor.u32 1.1754944e-38, %v324
    %v326 = vsel %vm323, %v325, %v321
    %v327 = vmul.f32 1.0, %v326
    %v329 = vsel %vm282, %v327, 0
    %v332 = vsel %vm149, %v112, 0
    %v335 = vsel %vm149, %v113, 0
    %337 = vmatpush.msra.mxu0 0.0
    %338 = vmatpush.msra.mxu0 0.0
    %339 = vmatpush.msra.mxu0 0.0
    %340 = vmatpush.msra.mxu0 0.0
    %341 = vmatpush.msra.mxu0 0.0
    %342 = vmatpush.msra.mxu0 0.0
    %343 = vmatpush.msra.mxu0 0.0
    %344 = vmatpush.msra.mxu0 0.0
    %345 = vmatpush.msra.mxu0 0.0
    %346 = vmatpush.msra.mxu0 0.0
    %347 = vmatpush.msra.mxu0 0.0
    %348 = vmatpush.msra.mxu0 0.0
    %349 = vmatpush.msra.mxu0 0.0
    %350 = vmatpush.msra.mxu0 0.0
    %351 = vmatpush.msra.mxu0 0.0
    %352 = vmatpush.msra.mxu0 %v332
    %353 = vmatmul.f32.gmra.mxu0 %v329
    %v354 = vpop.f32.mrf.mxu0
    %v355 = vadd.f32 0.0, %v354
    %356 = vdwg.mxu0
    %357 = vmatpush.msra.mxu0 0.0
    %358 = vmatpush.msra.mxu0 0.0
    %359 = vmatpush.msra.mxu0 0.0
    %360 = vmatpush.msra.mxu0 0.0
    %361 = vmatpush.msra.mxu0 0.0
    %362 = vmatpush.msra.mxu0 0.0
    %363 = vmatpush.msra.mxu0 0.0
    %364 = vmatpush.msra.mxu0 0.0
    %365 = vmatpush.msra.mxu0 0.0
    %366 = vmatpush.msra.mxu0 0.0
    %367 = vmatpush.msra.mxu0 0.0
    %368 = vmatpush.msra.mxu0 0.0
    %369 = vmatpush.msra.mxu0 0.0
    %370 = vmatpush.msra.mxu0 0.0
    %371 = vmatpush.msra.mxu0 0.0
    %372 = vmatpush.msra.mxu0 %v335
    %373 = vmatmul.f32.gmra.mxu0 %v329
    %v374 = vpop.f32.mrf.mxu0
    %v375 = vadd.f32 0.0, %v374
    %376 = vdwg.mxu0
    %v377 = vmul.f32 %v213, %v355
    %v378 = vmul.f32 %v214, %v375
    %379 = vrot.lane.b32.xlu0 %v377, 1
    %v380 = vpop.permute.xlu0 %379
    %381 = vrot.lane.b32.xlu0 %v378, 1
    %v382 = vpop.permute.xlu0 %381
    %v383 = vsel %vm126, %v380, %v382
    %v384 = vsel %vm126, %v382, %v380
    %v385 = vsel %vm91, 1, 0
    %v386 = vsel %vm92, 1, 0
    %vm387 = vcmp.eq.s32.totalorder %v385, 1
    %vm388 = vcmp.eq.s32.totalorder %v386, 1
    %v389 = vsel %vm387, %v384, 0.0
    %v390 = vsel %vm388, %v383, 0.0
    %391 = vrot.lane.b32.xlu0 %v377, 127
    %v392 = vpop.permute.xlu0 %391
    %393 = vrot.lane.b32.xlu0 %v378, 127
    %v394 = vpop.permute.xlu0 %393
    %v395 = vsel %vm135, %v392, %v394
    %v396 = vsel %vm135, %v394, %v392
    %v397 = vsel %vm99, 1, 0
    %v398 = vsel %vm100, 1, 0
    %vm399 = vcmp.eq.s32.totalorder %v397, 1
    %vm400 = vcmp.eq.s32.totalorder %v398, 1
    %v401 = vsel %vm399, %v395, 0.0
    %v402 = vsel %vm400, %v396, 0.0
    %v403 = vpack.c.bf16 %v377, %v389
    %v404 = vpack.c.bf16 %v378, %v390
    %v405 = vpack.c.bf16 %v401, %v401
    %v406 = vpack.c.bf16 %v402, %v402
    %v407 = vld [vmem:[%s5] sm:$0xf]
    %v408 = vld [vmem:[%s6] sm:$0xff]
    %410 = vset.pattern.permute.xlu0 0
    %411 = vperm.xlu0 %410, %v408
    %v412 = vpop.permute.xlu0 %411
    %vm414 = vcmask 195584
    %v416 = vsel %vm414, %v407, 0
    %vm418 = vcmask 1043456
    %v420 = vsel %vm418, %v405, 0
    %v423 = vsel %vm418, %v406, 0
    %425 = vmatpush.bf16.msra.mxu0 0
    %426 = vmatpush.bf16.msra.mxu0 0
    %427 = vmatpush.bf16.msra.mxu0 0
    %428 = vmatpush.bf16.msra.mxu0 0
    %429 = vmatpush.bf16.msra.mxu0 0
    %430 = vmatpush.bf16.msra.mxu0 0
    %431 = vmatpush.bf16.msra.mxu0 %v420
    %432 = vmatpush.bf16.msra.mxu0 %v403
    %433 = vmatmul.bf16.gmra.mxu0 %v416
    %v434 = vpop.f32.mrf.mxu0
    %v435 = vadd.f32 %v412, %v434
    %v436 = vpop.f32.mrf.mxu0
    %437 = vdwg.mxu0
    %438 = vmatpush.bf16.msra.mxu0 0
    %439 = vmatpush.bf16.msra.mxu0 0
    %440 = vmatpush.bf16.msra.mxu0 0
    %441 = vmatpush.bf16.msra.mxu0 0
    %442 = vmatpush.bf16.msra.mxu0 0
    %443 = vmatpush.bf16.msra.mxu0 0
    %444 = vmatpush.bf16.msra.mxu0 %v423
    %445 = vmatpush.bf16.msra.mxu0 %v404
    %446 = vmatmul.bf16.gmra.mxu0 %v416
    %v447 = vpop.f32.mrf.mxu0
    %v448 = vadd.f32 %v412, %v447
    %v449 = vpop.f32.mrf.mxu0
    %450 = vdwg.mxu0
    %vm451 = vcmp.gt.f32.partialorder %v435, 0.0
    %vm452 = vcmp.gt.f32.partialorder %v448, 0.0
    %v453 = vmin.f32 %v435, 0.0
    %v454 = vmin.f32 %v448, 0.0
    %v455 = vmul.f32 %v453, 1.442695
    %v456 = vpow.pop %v455
    %v457 = vmul.f32 %v454, 1.442695
    %v458 = vpow.pop %v457
    %v459 = vsub.f32 %v456, 1.0
    %v460 = vsub.f32 %v458, 1.0
    %v461 = vmul.f32 %v459, 1.6732632
    %v462 = vmul.f32 %v460, 1.6732632
    %v463 = vsel %vm451, %v435, %v461
    %v464 = vsel %vm452, %v448, %v462
    %v465 = vmul.f32 %v463, 1.050701
    %v466 = vmul.f32 %v464, 1.050701
    %467 = vmatpush.xpose.msra.mxu0 0.0
    %468 = vmatpush.xpose.msra.mxu0 0.0
    %469 = vmatpush.xpose.msra.mxu0 0.0
    %470 = vmatpush.xpose.msra.mxu0 0.0
    %471 = vmatpush.xpose.msra.mxu0 0.0
    %472 = vmatpush.xpose.msra.mxu0 0.0
    %473 = vmatpush.xpose.msra.mxu0 0.0
    %474 = vmatpush.xpose.msra.mxu0 0.0
    %475 = vmatpush.xpose.msra.mxu0 0.0
    %476 = vmatpush.xpose.msra.mxu0 0.0
    %477 = vmatpush.xpose.msra.mxu0 0.0
    %478 = vmatpush.xpose.msra.mxu0 0.0
    %479 = vmatpush.xpose.msra.mxu0 0.0
    %480 = vmatpush.xpose.msra.mxu0 0.0
    %481 = vmatpush.xpose.msra.mxu0 0.0
    %482 = vmatpush.xpose.msra.mxu0 %v114
    %483 = vmatmul.f32.gmra.mxu0 %v465
    %v484 = vpop.f32.mrf.mxu0
    %v485 = vadd.f32 0.0, %v484
    %486 = vdwg.mxu0
    %487 = vmatpush.xpose.msra.mxu0 0.0
    %488 = vmatpush.xpose.msra.mxu0 0.0
    %489 = vmatpush.xpose.msra.mxu0 0.0
    %490 = vmatpush.xpose.msra.mxu0 0.0
    %491 = vmatpush.xpose.msra.mxu0 0.0
    %492 = vmatpush.xpose.msra.mxu0 0.0
    %493 = vmatpush.xpose.msra.mxu0 0.0
    %494 = vmatpush.xpose.msra.mxu0 0.0
    %495 = vmatpush.xpose.msra.mxu0 0.0
    %496 = vmatpush.xpose.msra.mxu0 0.0
    %497 = vmatpush.xpose.msra.mxu0 0.0
    %498 = vmatpush.xpose.msra.mxu0 0.0
    %499 = vmatpush.xpose.msra.mxu0 0.0
    %500 = vmatpush.xpose.msra.mxu0 0.0
    %501 = vmatpush.xpose.msra.mxu0 0.0
    %502 = vmatpush.xpose.msra.mxu0 %v115
    %503 = vmatmul.f32.gmra.mxu0 %v466
    %v504 = vpop.f32.mrf.mxu0
    %v505 = vadd.f32 %v485, %v504
    %506 = vdwg.mxu0
    %v507 = vld [vmem:[%s7] sm:$0x3]
    %v509 = vsel %vm256, %v507, 0
    %511 = vmatpush.msra.mxu0 0.0
    %512 = vmatpush.msra.mxu0 0.0
    %513 = vmatpush.msra.mxu0 0.0
    %514 = vmatpush.msra.mxu0 0.0
    %515 = vmatpush.msra.mxu0 0.0
    %516 = vmatpush.msra.mxu0 0.0
    %517 = vmatpush.msra.mxu0 0.0
    %518 = vmatpush.msra.mxu0 0.0
    %519 = vmatpush.msra.mxu0 0.0
    %520 = vmatpush.msra.mxu0 0.0
    %521 = vmatpush.msra.mxu0 0.0
    %522 = vmatpush.msra.mxu0 0.0
    %523 = vmatpush.msra.mxu0 0.0
    %524 = vmatpush.msra.mxu0 0.0
    %525 = vmatpush.msra.mxu0 0.0
    %526 = vmatpush.msra.mxu0 %v505
    %527 = vmatmul.f32.gmra.mxu0 %v509
    %v528 = vpop.f32.mrf.mxu0
    %v529 = vadd.f32 0.0, %v528
    %530 = vdwg.mxu0
    %v531 = vmax.f32 %v529, 0.0
    %v532 = vld [vmem:[%s8] sm:$0xff]
    %v534 = vsel %vm282, %v532, 0
    %v537 = vsel %vm149, %v531, 0
    %539 = vmatpush.msra.mxu0 0.0
    %540 = vmatpush.msra.mxu0 0.0
    %541 = vmatpush.msra.mxu0 0.0
    %542 = vmatpush.msra.mxu0 0.0
    %543 = vmatpush.msra.mxu0 0.0
    %544 = vmatpush.msra.mxu0 0.0
    %545 = vmatpush.msra.mxu0 0.0
    %546 = vmatpush.msra.mxu0 0.0
    %547 = vmatpush.msra.mxu0 0.0
    %548 = vmatpush.msra.mxu0 0.0
    %549 = vmatpush.msra.mxu0 0.0
    %550 = vmatpush.msra.mxu0 0.0
    %551 = vmatpush.msra.mxu0 0.0
    %552 = vmatpush.msra.mxu0 0.0
    %553 = vmatpush.msra.mxu0 0.0
    %554 = vmatpush.msra.mxu0 %v537
    %555 = vmatmul.f32.gmra.mxu0 %v534
    %v556 = vpop.f32.mrf.mxu0
    %v557 = vadd.f32 0.0, %v556
    %558 = vdwg.mxu0
    %v559 = vxor.u32 %v557, 2147483648
    %v560 = vmul.f32 %v559, 1.442695
    %v561 = vpow.pop %v560
    %v562 = vadd.f32 %v561, 1.0
    %v563 = vrcp.pop %v562
    %v564 = vmul.f32 %v562, %v563
    %v565 = vsub.f32 1.0, %v564
    %v566 = vmul.f32 %v563, %v565
    %v567 = vadd.f32 %v563, %v566
    %vm568 = vweird.f32 %v562
    %vm569 = vweird.f32 %v563
    %vm570 = vmor %vm568, %vm569
    %v571 = vsel %vm570, %v563, %v567
    %v572 = vand.u32 2147483647, %v562
    %vm573 = vcmp.eq.f32.partialorder %v572, 8.507059e+37
    %v574 = vand.u32 %v562, 2147483648
    %v575 = vor.u32 1.1754944e-38, %v574
    %v576 = vsel %vm573, %v575, %v571
    %v577 = vmul.f32 1.0, %v576
    %v579 = vsel %vm282, %v577, 0
    %581 = vmatpush.msra.mxu0 0.0
    %582 = vmatpush.msra.mxu0 0.0
    %583 = vmatpush.msra.mxu0 0.0
    %584 = vmatpush.msra.mxu0 0.0
    %585 = vmatpush.msra.mxu0 0.0
    %586 = vmatpush.msra.mxu0 0.0
    %587 = vmatpush.msra.mxu0 0.0
    %588 = vmatpush.msra.mxu0 0.0
    %589 = vmatpush.msra.mxu0 0.0
    %590 = vmatpush.msra.mxu0 0.0
    %591 = vmatpush.msra.mxu0 0.0
    %592 = vmatpush.msra.mxu0 0.0
    %593 = vmatpush.msra.mxu0 0.0
    %594 = vmatpush.msra.mxu0 0.0
    %595 = vmatpush.msra.mxu0 0.0
    %596 = vmatpush.msra.mxu0 %v332
    %597 = vmatmul.f32.gmra.mxu0 %v579
    %v598 = vpop.f32.mrf.mxu0
    %v599 = vadd.f32 0.0, %v598
    %600 = vdwg.mxu0
    %601 = vmatpush.msra.mxu0 0.0
    %602 = vmatpush.msra.mxu0 0.0
    %603 = vmatpush.msra.mxu0 0.0
    %604 = vmatpush.msra.mxu0 0.0
    %605 = vmatpush.msra.mxu0 0.0
    %606 = vmatpush.msra.mxu0 0.0
    %607 = vmatpush.msra.mxu0 0.0
    %608 = vmatpush.msra.mxu0 0.0
    %609 = vmatpush.msra.mxu0 0.0
    %610 = vmatpush.msra.mxu0 0.0
    %611 = vmatpush.msra.mxu0 0.0
    %612 = vmatpush.msra.mxu0 0.0
    %613 = vmatpush.msra.mxu0 0.0
    %614 = vmatpush.msra.mxu0 0.0
    %615 = vmatpush.msra.mxu0 0.0
    %616 = vmatpush.msra.mxu0 %v335
    %617 = vmatmul.f32.gmra.mxu0 %v579
    %v618 = vpop.f32.mrf.mxu0
    %v619 = vadd.f32 0.0, %v618
    %620 = vdwg.mxu0
    %v621 = vmul.f32 %v465, %v599
    %v622 = vmul.f32 %v466, %v619
    %623 = vrot.lane.b32.xlu0 %v621, 1
    %v624 = vpop.permute.xlu0 %623
    %625 = vrot.lane.b32.xlu0 %v622, 1
    %v626 = vpop.permute.xlu0 %625
    %v627 = vsel %vm126, %v624, %v626
    %v628 = vsel %vm126, %v626, %v624
    %v629 = vsel %vm387, %v628, 0.0
    %v630 = vsel %vm388, %v627, 0.0
    %631 = vrot.lane.b32.xlu0 %v621, 127
    %v632 = vpop.permute.xlu0 %631
    %633 = vrot.lane.b32.xlu0 %v622, 127
    %v634 = vpop.permute.xlu0 %633
    %v635 = vsel %vm135, %v632, %v634
    %v636 = vsel %vm135, %v634, %v632
    %v637 = vsel %vm399, %v635, 0.0
    %v638 = vsel %vm400, %v636, 0.0
    %v639 = vpack.c.bf16 %v621, %v629
    %v640 = vpack.c.bf16 %v622, %v630
    %v641 = vpack.c.bf16 %v637, %v637
    %v642 = vpack.c.bf16 %v638, %v638
    %v643 = vld [vmem:[%s9] sm:$0xf]
    %v644 = vld [vmem:[%s9 + $0x4] sm:$0xf]
    %v645 = vld [vmem:[%s10] sm:$0xff]
    %v646 = vld [vmem:[%s10 + $0x8] sm:$0xff]
    %648 = vset.pattern.permute.xlu0 0
    %649 = vperm.xlu0 %648, %v645
    %v650 = vpop.permute.xlu0 %649
    %653 = vset.pattern.permute.xlu0 0
    %654 = vperm.xlu0 %653, %v646
    %v655 = vpop.permute.xlu0 %654
    %v659 = vunpack.c.l.b16 %v643
    %v660 = vunpack.c.l.b16 %v644
    %v661 = vpack.c.b16 %v660, %v659
    %v663 = vsel %vm414, %v661, 0
    %v666 = vsel %vm418, %v641, 0
    %v669 = vsel %vm418, %v642, 0
    %671 = vmatpush.bf16.msra.mxu0 0
    %672 = vmatpush.bf16.msra.mxu0 0
    %673 = vmatpush.bf16.msra.mxu0 0
    %674 = vmatpush.bf16.msra.mxu0 0
    %675 = vmatpush.bf16.msra.mxu0 0
    %676 = vmatpush.bf16.msra.mxu0 0
    %677 = vmatpush.bf16.msra.mxu0 %v666
    %678 = vmatpush.bf16.msra.mxu0 %v639
    %679 = vmatmul.bf16.gmra.mxu0 %v663
    %v680 = vpop.f32.mrf.mxu0
    %v681 = vadd.f32 %v650, %v680
    %v682 = vpop.f32.mrf.mxu0
    %v683 = vadd.f32 %v655, %v682
    %684 = vdwg.mxu0
    %685 = vmatpush.bf16.msra.mxu0 0
    %686 = vmatpush.bf16.msra.mxu0 0
    %687 = vmatpush.bf16.msra.mxu0 0
    %688 = vmatpush.bf16.msra.mxu0 0
    %689 = vmatpush.bf16.msra.mxu0 0
    %690 = vmatpush.bf16.msra.mxu0 0
    %691 = vmatpush.bf16.msra.mxu0 %v669
    %692 = vmatpush.bf16.msra.mxu0 %v640
    %693 = vmatmul.bf16.gmra.mxu0 %v663
    %v694 = vpop.f32.mrf.mxu0
    %v695 = vadd.f32 %v650, %v694
    %v696 = vpop.f32.mrf.mxu0
    %v697 = vadd.f32 %v655, %v696
    %698 = vdwg.mxu0
    %vm699 = vcmp.gt.f32.partialorder %v681, 0.0
    %vm700 = vcmp.gt.f32.partialorder %v695, 0.0
    %vm701 = vcmp.gt.f32.partialorder %v683, 0.0
    %vm702 = vcmp.gt.f32.partialorder %v697, 0.0
    %v703 = vmin.f32 %v681, 0.0
    %v704 = vmin.f32 %v695, 0.0
    %v705 = vmin.f32 %v683, 0.0
    %v706 = vmin.f32 %v697, 0.0
    %v707 = vmul.f32 %v703, 1.442695
    %v708 = vpow.pop %v707
    %v709 = vmul.f32 %v704, 1.442695
    %v710 = vpow.pop %v709
    %v711 = vmul.f32 %v705, 1.442695
    %v712 = vpow.pop %v711
    %v713 = vmul.f32 %v706, 1.442695
    %v714 = vpow.pop %v713
    %v715 = vsub.f32 %v708, 1.0
    %v716 = vsub.f32 %v710, 1.0
    %v717 = vsub.f32 %v712, 1.0
    %v718 = vsub.f32 %v714, 1.0
    %v719 = vmul.f32 %v715, 1.6732632
    %v720 = vmul.f32 %v716, 1.6732632
    %v721 = vmul.f32 %v717, 1.6732632
    %v722 = vmul.f32 %v718, 1.6732632
    %v723 = vsel %vm699, %v681, %v719
    %v724 = vsel %vm700, %v695, %v720
    %v725 = vsel %vm701, %v683, %v721
    %v726 = vsel %vm702, %v697, %v722
    %v727 = vmul.f32 %v723, 1.050701
    %v728 = vmul.f32 %v724, 1.050701
    %v729 = vmul.f32 %v725, 1.050701
    %v730 = vmul.f32 %v726, 1.050701
    %731 = vmatpush.xpose.msra.mxu0 0.0
    %732 = vmatpush.xpose.msra.mxu0 0.0
    %733 = vmatpush.xpose.msra.mxu0 0.0
    %734 = vmatpush.xpose.msra.mxu0 0.0
    %735 = vmatpush.xpose.msra.mxu0 0.0
    %736 = vmatpush.xpose.msra.mxu0 0.0
    %737 = vmatpush.xpose.msra.mxu0 0.0
    %738 = vmatpush.xpose.msra.mxu0 0.0
    %739 = vmatpush.xpose.msra.mxu0 0.0
    %740 = vmatpush.xpose.msra.mxu0 0.0
    %741 = vmatpush.xpose.msra.mxu0 0.0
    %742 = vmatpush.xpose.msra.mxu0 0.0
    %743 = vmatpush.xpose.msra.mxu0 0.0
    %744 = vmatpush.xpose.msra.mxu0 0.0
    %745 = vmatpush.xpose.msra.mxu0 0.0
    %746 = vmatpush.xpose.msra.mxu0 %v114
    %747 = vmatmul.f32.gmra.mxu0 %v727
    %v748 = vpop.f32.mrf.mxu0
    %v749 = vadd.f32 0.0, %v748
    %750 = vmatmul.f32.gmra.mxu0 %v729
    %v751 = vpop.f32.mrf.mxu0
    %v752 = vadd.f32 0.0, %v751
    %753 = vdwg.mxu0
    %754 = vmatpush.xpose.msra.mxu0 0.0
    %755 = vmatpush.xpose.msra.mxu0 0.0
    %756 = vmatpush.xpose.msra.mxu0 0.0
    %757 = vmatpush.xpose.msra.mxu0 0.0
    %758 = vmatpush.xpose.msra.mxu0 0.0
    %759 = vmatpush.xpose.msra.mxu0 0.0
    %760 = vmatpush.xpose.msra.mxu0 0.0
    %761 = vmatpush.xpose.msra.mxu0 0.0
    %762 = vmatpush.xpose.msra.mxu0 0.0
    %763 = vmatpush.xpose.msra.mxu0 0.0
    %764 = vmatpush.xpose.msra.mxu0 0.0
    %765 = vmatpush.xpose.msra.mxu0 0.0
    %766 = vmatpush.xpose.msra.mxu0 0.0
    %767 = vmatpush.xpose.msra.mxu0 0.0
    %768 = vmatpush.xpose.msra.mxu0 0.0
    %769 = vmatpush.xpose.msra.mxu0 %v115
    %770 = vmatmul.f32.gmra.mxu0 %v728
    %v771 = vpop.f32.mrf.mxu0
    %v772 = vadd.f32 %v749, %v771
    %773 = vmatmul.f32.gmra.mxu0 %v730
    %v774 = vpop.f32.mrf.mxu0
    %v775 = vadd.f32 %v752, %v774
    %776 = vdwg.mxu0
    %v777 = vld [vmem:[%s11] sm:$0xf]
    %vm778 = vcmask 130048
    %v780 = vsel %vm778, %v777, 0
    %782 = vmatpush.msra.mxu0 0.0
    %783 = vmatpush.msra.mxu0 0.0
    %784 = vmatpush.msra.mxu0 0.0
    %785 = vmatpush.msra.mxu0 0.0
    %786 = vmatpush.msra.mxu0 0.0
    %787 = vmatpush.msra.mxu0 0.0
    %788 = vmatpush.msra.mxu0 0.0
    %789 = vmatpush.msra.mxu0 0.0
    %790 = vmatpush.msra.mxu0 0.0
    %791 = vmatpush.msra.mxu0 0.0
    %792 = vmatpush.msra.mxu0 0.0
    %793 = vmatpush.msra.mxu0 0.0
    %794 = vmatpush.msra.mxu0 0.0
    %795 = vmatpush.msra.mxu0 0.0
    %796 = vmatpush.msra.mxu0 %v775
    %797 = vmatpush.msra.mxu0 %v772
    %798 = vmatmul.f32.gmra.mxu0 %v780
    %v799 = vpop.f32.mrf.mxu0
    %v800 = vadd.f32 0.0, %v799
    %801 = vdwg.mxu0
    %v802 = vmax.f32 %v800, 0.0
    %v803 = vld [vmem:[%s12] sm:$0xff]
    %v804 = vld [vmem:[%s12 + $0x8] sm:$0xff]
    %vm805 = vcmask 31744
    %v807 = vsel %vm805, %v803, 0
    %v810 = vsel %vm805, %v804, 0
    %v813 = vsel %vm418, %v802, 0
    %815 = vmatpush.msra.mxu0 0.0
    %816 = vmatpush.msra.mxu0 0.0
    %817 = vmatpush.msra.mxu0 0.0
    %818 = vmatpush.msra.mxu0 0.0
    %819 = vmatpush.msra.mxu0 0.0
    %820 = vmatpush.msra.mxu0 0.0
    %821 = vmatpush.msra.mxu0 0.0
    %822 = vmatpush.msra.mxu0 0.0
    %823 = vmatpush.msra.mxu0 0.0
    %824 = vmatpush.msra.mxu0 0.0
    %825 = vmatpush.msra.mxu0 0.0
    %826 = vmatpush.msra.mxu0 0.0
    %827 = vmatpush.msra.mxu0 0.0
    %828 = vmatpush.msra.mxu0 0.0
    %829 = vmatpush.msra.mxu0 0.0
    %830 = vmatpush.msra.mxu0 %v813
    %831 = vmatmul.f32.gmra.mxu0 %v807
    %v832 = vpop.f32.mrf.mxu0
    %v833 = vadd.f32 0.0, %v832
    %834 = vmatmul.f32.gmra.mxu0 %v810
    %v835 = vpop.f32.mrf.mxu0
    %v836 = vadd.f32 0.0, %v835
    %837 = vdwg.mxu0
    %v838 = vxor.u32 %v833, 2147483648
    %v839 = vxor.u32 %v836, 2147483648
    %v840 = vmul.f32 %v838, 1.442695
    %v841 = vpow.pop %v840
    %v842 = vmul.f32 %v839, 1.442695
    %v843 = vpow.pop %v842
    %v844 = vadd.f32 %v841, 1.0
    %v845 = vadd.f32 %v843, 1.0
    %v846 = vrcp.pop %v844
    %v847 = vmul.f32 %v844, %v846
    %v848 = vsub.f32 1.0, %v847
    %v849 = vmul.f32 %v846, %v848
    %v850 = vadd.f32 %v846, %v849
    %vm851 = vweird.f32 %v844
    %vm852 = vweird.f32 %v846
    %vm853 = vmor %vm851, %vm852
    %v854 = vsel %vm853, %v846, %v850
    %v855 = vand.u32 2147483647, %v844
    %vm856 = vcmp.eq.f32.partialorder %v855, 8.507059e+37
    %v857 = vand.u32 %v844, 2147483648
    %v858 = vor.u32 1.1754944e-38, %v857
    %v859 = vsel %vm856, %v858, %v854
    %v860 = vmul.f32 1.0, %v859
    %v861 = vrcp.pop %v845
    %v862 = vmul.f32 %v845, %v861
    %v863 = vsub.f32 1.0, %v862
    %v864 = vmul.f32 %v861, %v863
    %v865 = vadd.f32 %v861, %v864
    %vm866 = vweird.f32 %v845
    %vm867 = vweird.f32 %v861
    %vm868 = vmor %vm866, %vm867
    %v869 = vsel %vm868, %v861, %v865
    %v870 = vand.u32 2147483647, %v845
    %vm871 = vcmp.eq.f32.partialorder %v870, 8.507059e+37
    %v872 = vand.u32 %v845, 2147483648
    %v873 = vor.u32 1.1754944e-38, %v872
    %v874 = vsel %vm871, %v873, %v869
    %v875 = vmul.f32 1.0, %v874
    %v877 = vsel %vm282, %v860, 0
    %v880 = vsel %vm282, %v875, 0
    %882 = vmatpush.msra.mxu0 0.0
    %883 = vmatpush.msra.mxu0 0.0
    %884 = vmatpush.msra.mxu0 0.0
    %885 = vmatpush.msra.mxu0 0.0
    %886 = vmatpush.msra.mxu0 0.0
    %887 = vmatpush.msra.mxu0 0.0
    %888 = vmatpush.msra.mxu0 0.0
    %889 = vmatpush.msra.mxu0 0.0
    %890 = vmatpush.msra.mxu0 0.0
    %891 = vmatpush.msra.mxu0 0.0
    %892 = vmatpush.msra.mxu0 0.0
    %893 = vmatpush.msra.mxu0 0.0
    %894 = vmatpush.msra.mxu0 0.0
    %895 = vmatpush.msra.mxu0 0.0
    %896 = vmatpush.msra.mxu0 0.0
    %897 = vmatpush.msra.mxu0 %v332
    %898 = vmatmul.f32.gmra.mxu0 %v877
    %v899 = vpop.f32.mrf.mxu0
    %v900 = vadd.f32 0.0, %v899
    %901 = vmatmul.f32.gmra.mxu0 %v880
    %v902 = vpop.f32.mrf.mxu0
    %v903 = vadd.f32 0.0, %v902
    %904 = vdwg.mxu0
    %905 = vmatpush.msra.mxu0 0.0
    %906 = vmatpush.msra.mxu0 0.0
    %907 = vmatpush.msra.mxu0 0.0
    %908 = vmatpush.msra.mxu0 0.0
    %909 = vmatpush.msra.mxu0 0.0
    %910 = vmatpush.msra.mxu0 0.0
    %911 = vmatpush.msra.mxu0 0.0
    %912 = vmatpush.msra.mxu0 0.0
    %913 = vmatpush.msra.mxu0 0.0
    %914 = vmatpush.msra.mxu0 0.0
    %915 = vmatpush.msra.mxu0 0.0
    %916 = vmatpush.msra.mxu0 0.0
    %917 = vmatpush.msra.mxu0 0.0
    %918 = vmatpush.msra.mxu0 0.0
    %919 = vmatpush.msra.mxu0 0.0
    %920 = vmatpush.msra.mxu0 %v335
    %921 = vmatmul.f32.gmra.mxu0 %v877
    %v922 = vpop.f32.mrf.mxu0
    %v923 = vadd.f32 0.0, %v922
    %924 = vmatmul.f32.gmra.mxu0 %v880
    %v925 = vpop.f32.mrf.mxu0
    %v926 = vadd.f32 0.0, %v925
    %927 = vdwg.mxu0
    %v928 = vmul.f32 %v727, %v900
    %v929 = vmul.f32 %v728, %v923
    %v930 = vmul.f32 %v729, %v903
    %v931 = vmul.f32 %v730, %v926
    %932 = vrot.lane.b32.xlu0 %v928, 1
    %v933 = vpop.permute.xlu0 %932
    %934 = vrot.lane.b32.xlu0 %v930, 1
    %v935 = vpop.permute.xlu0 %934
    %936 = vrot.lane.b32.xlu0 %v929, 1
    %v937 = vpop.permute.xlu0 %936
    %938 = vrot.lane.b32.xlu0 %v931, 1
    %v939 = vpop.permute.xlu0 %938
    %v940 = vsel %vm126, %v933, %v937
    %v941 = vsel %vm126, %v935, %v939
    %v942 = vsel %vm126, %v937, %v933
    %v943 = vsel %vm126, %v939, %v935
    %v944 = vsel %vm387, %v942, 0.0
    %v945 = vsel %vm388, %v940, 0.0
    %v946 = vsel %vm387, %v943, 0.0
    %v947 = vsel %vm388, %v941, 0.0
    %948 = vrot.lane.b32.xlu0 %v928, 127
    %v949 = vpop.permute.xlu0 %948
    %950 = vrot.lane.b32.xlu0 %v930, 127
    %v951 = vpop.permute.xlu0 %950
    %952 = vrot.lane.b32.xlu0 %v929, 127
    %v953 = vpop.permute.xlu0 %952
    %954 = vrot.lane.b32.xlu0 %v931, 127
    %v955 = vpop.permute.xlu0 %954
    %v956 = vsel %vm135, %v949, %v953
    %v957 = vsel %vm135, %v951, %v955
    %v958 = vsel %vm135, %v953, %v949
    %v959 = vsel %vm135, %v955, %v951
    %v960 = vsel %vm399, %v956, 0.0
    %v961 = vsel %vm400, %v958, 0.0
    %v962 = vsel %vm399, %v957, 0.0
    %v963 = vsel %vm400, %v959, 0.0
    %v964 = vpack.c.bf16 %v946, %v944
    %v965 = vpack.c.bf16 %v947, %v945
    %v966 = vpack.c.bf16 %v930, %v928
    %v967 = vpack.c.bf16 %v931, %v929
    %v968 = vpack.c.bf16 %v962, %v960
    %v969 = vpack.c.bf16 %v963, %v961
    %v970 = vld [vmem:[%s13] sm:$0xf]
    %v971 = vld [vmem:[%s13 + $0x4] sm:$0xf]
    %v972 = vld [vmem:[%s14] sm:$0xff]
    %v973 = vld [vmem:[%s14 + $0x8] sm:$0xff]
    %975 = vset.pattern.permute.xlu0 0
    %976 = vperm.xlu0 %975, %v972
    %v977 = vpop.permute.xlu0 %976
    %980 = vset.pattern.permute.xlu0 0
    %981 = vperm.xlu0 %980, %v973
    %v982 = vpop.permute.xlu0 %981
    %v986 = vunpack.c.l.b16 %v970
    %v987 = vunpack.c.l.b16 %v971
    %v988 = vpack.c.b16 %v987, %v986
    %vm989 = vcmask 392192
    %v991 = vsel %vm989, %v988, 0
    %993 = vmatpush.bf16.msra.mxu0 0
    %994 = vmatpush.bf16.msra.mxu0 0
    %995 = vmatpush.bf16.msra.mxu0 0
    %996 = vmatpush.bf16.msra.mxu0 0
    %997 = vmatpush.bf16.msra.mxu0 0
    %998 = vmatpush.bf16.msra.mxu0 %v968
    %999 = vmatpush.bf16.msra.mxu0 %v966
    %1000 = vmatpush.bf16.msra.mxu0 %v964
    %1001 = vmatmul.bf16.gmra.mxu0 %v991
    %v1002 = vpop.f32.mrf.mxu0
    %v1003 = vadd.f32 %v977, %v1002
    %v1004 = vpop.f32.mrf.mxu0
    %v1005 = vadd.f32 %v982, %v1004
    %1006 = vdwg.mxu0
    %1007 = vmatpush.bf16.msra.mxu0 0
    %1008 = vmatpush.bf16.msra.mxu0 0
    %1009 = vmatpush.bf16.msra.mxu0 0
    %1010 = vmatpush.bf16.msra.mxu0 0
    %1011 = vmatpush.bf16.msra.mxu0 0
    %1012 = vmatpush.bf16.msra.mxu0 %v969
    %1013 = vmatpush.bf16.msra.mxu0 %v967
    %1014 = vmatpush.bf16.msra.mxu0 %v965
    %1015 = vmatmul.bf16.gmra.mxu0 %v991
    %v1016 = vpop.f32.mrf.mxu0
    %v1017 = vadd.f32 %v977, %v1016
    %v1018 = vpop.f32.mrf.mxu0
    %v1019 = vadd.f32 %v982, %v1018
    %1020 = vdwg.mxu0
    %vm1021 = vcmp.gt.f32.partialorder %v1003, 0.0
    %vm1022 = vcmp.gt.f32.partialorder %v1017, 0.0
    %vm1023 = vcmp.gt.f32.partialorder %v1005, 0.0
    %vm1024 = vcmp.gt.f32.partialorder %v1019, 0.0
    %v1025 = vmin.f32 %v1003, 0.0
    %v1026 = vmin.f32 %v1017, 0.0
    %v1027 = vmin.f32 %v1005, 0.0
    %v1028 = vmin.f32 %v1019, 0.0
    %v1029 = vmul.f32 %v1025, 1.442695
    %v1030 = vpow.pop %v1029
    %v1031 = vmul.f32 %v1026, 1.442695
    %v1032 = vpow.pop %v1031
    %v1033 = vmul.f32 %v1027, 1.442695
    %v1034 = vpow.pop %v1033
    %v1035 = vmul.f32 %v1028, 1.442695
    %v1036 = vpow.pop %v1035
    %v1037 = vsub.f32 %v1030, 1.0
    %v1038 = vsub.f32 %v1032, 1.0
    %v1039 = vsub.f32 %v1034, 1.0
    %v1040 = vsub.f32 %v1036, 1.0
    %v1041 = vmul.f32 %v1037, 1.6732632
    %v1042 = vmul.f32 %v1038, 1.6732632
    %v1043 = vmul.f32 %v1039, 1.6732632
    %v1044 = vmul.f32 %v1040, 1.6732632
    %v1045 = vsel %vm1021, %v1003, %v1041
    %v1046 = vsel %vm1022, %v1017, %v1042
    %v1047 = vsel %vm1023, %v1005, %v1043
    %v1048 = vsel %vm1024, %v1019, %v1044
    %v1049 = vmul.f32 %v1045, 1.050701
    %v1050 = vmul.f32 %v1046, 1.050701
    %v1051 = vmul.f32 %v1047, 1.050701
    %v1052 = vmul.f32 %v1048, 1.050701
    %1053 = vmatpush.xpose.msra.mxu0 0.0
    %1054 = vmatpush.xpose.msra.mxu0 0.0
    %1055 = vmatpush.xpose.msra.mxu0 0.0
    %1056 = vmatpush.xpose.msra.mxu0 0.0
    %1057 = vmatpush.xpose.msra.mxu0 0.0
    %1058 = vmatpush.xpose.msra.mxu0 0.0
    %1059 = vmatpush.xpose.msra.mxu0 0.0
    %1060 = vmatpush.xpose.msra.mxu0 0.0
    %1061 = vmatpush.xpose.msra.mxu0 0.0
    %1062 = vmatpush.xpose.msra.mxu0 0.0
    %1063 = vmatpush.xpose.msra.mxu0 0.0
    %1064 = vmatpush.xpose.msra.mxu0 0.0
    %1065 = vmatpush.xpose.msra.mxu0 0.0
    %1066 = vmatpush.xpose.msra.mxu0 0.0
    %1067 = vmatpush.xpose.msra.mxu0 0.0
    %1068 = vmatpush.xpose.msra.mxu0 %v114
    %1069 = vmatmul.f32.gmra.mxu0 %v1049
    %v1070 = vpop.f32.mrf.mxu0
    %v1071 = vadd.f32 0.0, %v1070
    %1072 = vmatmul.f32.gmra.mxu0 %v1051
    %v1073 = vpop.f32.mrf.mxu0
    %v1074 = vadd.f32 0.0, %v1073
    %1075 = vdwg.mxu0
    %1076 = vmatpush.xpose.msra.mxu0 0.0
    %1077 = vmatpush.xpose.msra.mxu0 0.0
    %1078 = vmatpush.xpose.msra.mxu0 0.0
    %1079 = vmatpush.xpose.msra.mxu0 0.0
    %1080 = vmatpush.xpose.msra.mxu0 0.0
    %1081 = vmatpush.xpose.msra.mxu0 0.0
    %1082 = vmatpush.xpose.msra.mxu0 0.0
    %1083 = vmatpush.xpose.msra.mxu0 0.0
    %1084 = vmatpush.xpose.msra.mxu0 0.0
    %1085 = vmatpush.xpose.msra.mxu0 0.0
    %1086 = vmatpush.xpose.msra.mxu0 0.0
    %1087 = vmatpush.xpose.msra.mxu0 0.0
    %1088 = vmatpush.xpose.msra.mxu0 0.0
    %1089 = vmatpush.xpose.msra.mxu0 0.0
    %1090 = vmatpush.xpose.msra.mxu0 0.0
    %1091 = vmatpush.xpose.msra.mxu0 %v115
    %1092 = vmatmul.f32.gmra.mxu0 %v1050
    %v1093 = vpop.f32.mrf.mxu0
    %v1094 = vadd.f32 %v1071, %v1093
    %1095 = vmatmul.f32.gmra.mxu0 %v1052
    %v1096 = vpop.f32.mrf.mxu0
    %v1097 = vadd.f32 %v1074, %v1096
    %1098 = vdwg.mxu0
    %v1099 = vld [vmem:[%s15] sm:$0xf]
    %v1101 = vsel %vm778, %v1099, 0
    %1103 = vmatpush.msra.mxu0 0.0
    %1104 = vmatpush.msra.mxu0 0.0
    %1105 = vmatpush.msra.mxu0 0.0
    %1106 = vmatpush.msra.mxu0 0.0
    %1107 = vmatpush.msra.mxu0 0.0
    %1108 = vmatpush.msra.mxu0 0.0
    %1109 = vmatpush.msra.mxu0 0.0
    %1110 = vmatpush.msra.mxu0 0.0
    %1111 = vmatpush.msra.mxu0 0.0
    %1112 = vmatpush.msra.mxu0 0.0
    %1113 = vmatpush.msra.mxu0 0.0
    %1114 = vmatpush.msra.mxu0 0.0
    %1115 = vmatpush.msra.mxu0 0.0
    %1116 = vmatpush.msra.mxu0 0.0
    %1117 = vmatpush.msra.mxu0 %v1097
    %1118 = vmatpush.msra.mxu0 %v1094
    %1119 = vmatmul.f32.gmra.mxu0 %v1101
    %v1120 = vpop.f32.mrf.mxu0
    %v1121 = vadd.f32 0.0, %v1120
    %1122 = vdwg.mxu0
    %v1123 = vmax.f32 %v1121, 0.0
    %v1124 = vld [vmem:[%s16] sm:$0xff]
    %v1125 = vld [vmem:[%s16 + $0x8] sm:$0xff]
    %v1127 = vsel %vm805, %v1124, 0
    %v1130 = vsel %vm805, %v1125, 0
    %v1133 = vsel %vm418, %v1123, 0
    %1135 = vmatpush.msra.mxu0 0.0
    %1136 = vmatpush.msra.mxu0 0.0
    %1137 = vmatpush.msra.mxu0 0.0
    %1138 = vmatpush.msra.mxu0 0.0
    %1139 = vmatpush.msra.mxu0 0.0
    %1140 = vmatpush.msra.mxu0 0.0
    %1141 = vmatpush.msra.mxu0 0.0
    %1142 = vmatpush.msra.mxu0 0.0
    %1143 = vmatpush.msra.mxu0 0.0
    %1144 = vmatpush.msra.mxu0 0.0
    %1145 = vmatpush.msra.mxu0 0.0
    %1146 = vmatpush.msra.mxu0 0.0
    %1147 = vmatpush.msra.mxu0 0.0
    %1148 = vmatpush.msra.mxu0 0.0
    %1149 = vmatpush.msra.mxu0 0.0
    %1150 = vmatpush.msra.mxu0 %v1133
    %1151 = vmatmul.f32.gmra.mxu0 %v1127
    %v1152 = vpop.f32.mrf.mxu0
    %v1153 = vadd.f32 0.0, %v1152
    %1154 = vmatmul.f32.gmra.mxu0 %v1130
    %v1155 = vpop.f32.mrf.mxu0
    %v1156 = vadd.f32 0.0, %v1155
    %1157 = vdwg.mxu0
    %v1158 = vxor.u32 %v1153, 2147483648
    %v1159 = vxor.u32 %v1156, 2147483648
    %v1160 = vmul.f32 %v1158, 1.442695
    %v1161 = vpow.pop %v1160
    %v1162 = vmul.f32 %v1159, 1.442695
    %v1163 = vpow.pop %v1162
    %v1164 = vadd.f32 %v1161, 1.0
    %v1165 = vadd.f32 %v1163, 1.0
    %v1166 = vrcp.pop %v1164
    %v1167 = vmul.f32 %v1164, %v1166
    %v1168 = vsub.f32 1.0, %v1167
    %v1169 = vmul.f32 %v1166, %v1168
    %v1170 = vadd.f32 %v1166, %v1169
    %vm1171 = vweird.f32 %v1164
    %vm1172 = vweird.f32 %v1166
    %vm1173 = vmor %vm1171, %vm1172
    %v1174 = vsel %vm1173, %v1166, %v1170
    %v1175 = vand.u32 2147483647, %v1164
    %vm1176 = vcmp.eq.f32.partialorder %v1175, 8.507059e+37
    %v1177 = vand.u32 %v1164, 2147483648
    %v1178 = vor.u32 1.1754944e-38, %v1177
    %v1179 = vsel %vm1176, %v1178, %v1174
    %v1180 = vmul.f32 1.0, %v1179
    %v1181 = vrcp.pop %v1165
    %v1182 = vmul.f32 %v1165, %v1181
    %v1183 = vsub.f32 1.0, %v1182
    %v1184 = vmul.f32 %v1181, %v1183
    %v1185 = vadd.f32 %v1181, %v1184
    %vm1186 = vweird.f32 %v1165
    %vm1187 = vweird.f32 %v1181
    %vm1188 = vmor %vm1186, %vm1187
    %v1189 = vsel %vm1188, %v1181, %v1185
    %v1190 = vand.u32 2147483647, %v1165
    %vm1191 = vcmp.eq.f32.partialorder %v1190, 8.507059e+37
    %v1192 = vand.u32 %v1165, 2147483648
    %v1193 = vor.u32 1.1754944e-38, %v1192
    %v1194 = vsel %vm1191, %v1193, %v1189
    %v1195 = vmul.f32 1.0, %v1194
    %v1197 = vsel %vm282, %v1180, 0
    %v1200 = vsel %vm282, %v1195, 0
    %1202 = vmatpush.msra.mxu0 0.0
    %1203 = vmatpush.msra.mxu0 0.0
    %1204 = vmatpush.msra.mxu0 0.0
    %1205 = vmatpush.msra.mxu0 0.0
    %1206 = vmatpush.msra.mxu0 0.0
    %1207 = vmatpush.msra.mxu0 0.0
    %1208 = vmatpush.msra.mxu0 0.0
    %1209 = vmatpush.msra.mxu0 0.0
    %1210 = vmatpush.msra.mxu0 0.0
    %1211 = vmatpush.msra.mxu0 0.0
    %1212 = vmatpush.msra.mxu0 0.0
    %1213 = vmatpush.msra.mxu0 0.0
    %1214 = vmatpush.msra.mxu0 0.0
    %1215 = vmatpush.msra.mxu0 0.0
    %1216 = vmatpush.msra.mxu0 0.0
    %1217 = vmatpush.msra.mxu0 %v332
    %1218 = vmatmul.f32.gmra.mxu0 %v1197
    %v1219 = vpop.f32.mrf.mxu0
    %v1220 = vadd.f32 0.0, %v1219
    %1221 = vmatmul.f32.gmra.mxu0 %v1200
    %v1222 = vpop.f32.mrf.mxu0
    %v1223 = vadd.f32 0.0, %v1222
    %1224 = vdwg.mxu0
    %1225 = vmatpush.msra.mxu0 0.0
    %1226 = vmatpush.msra.mxu0 0.0
    %1227 = vmatpush.msra.mxu0 0.0
    %1228 = vmatpush.msra.mxu0 0.0
    %1229 = vmatpush.msra.mxu0 0.0
    %1230 = vmatpush.msra.mxu0 0.0
    %1231 = vmatpush.msra.mxu0 0.0
    %1232 = vmatpush.msra.mxu0 0.0
    %1233 = vmatpush.msra.mxu0 0.0
    %1234 = vmatpush.msra.mxu0 0.0
    %1235 = vmatpush.msra.mxu0 0.0
    %1236 = vmatpush.msra.mxu0 0.0
    %1237 = vmatpush.msra.mxu0 0.0
    %1238 = vmatpush.msra.mxu0 0.0
    %1239 = vmatpush.msra.mxu0 0.0
    %1240 = vmatpush.msra.mxu0 %v335
    %1241 = vmatmul.f32.gmra.mxu0 %v1197
    %v1242 = vpop.f32.mrf.mxu0
    %v1243 = vadd.f32 0.0, %v1242
    %1244 = vmatmul.f32.gmra.mxu0 %v1200
    %v1245 = vpop.f32.mrf.mxu0
    %v1246 = vadd.f32 0.0, %v1245
    %1247 = vdwg.mxu0
    %v1248 = vmul.f32 %v1049, %v1220
    %v1249 = vmul.f32 %v1050, %v1243
    %v1250 = vmul.f32 %v1051, %v1223
    %v1251 = vmul.f32 %v1052, %v1246
    %1252 = vmatpush.xpose.msra.mxu0 0.0
    %1253 = vmatpush.xpose.msra.mxu0 0.0
    %1254 = vmatpush.xpose.msra.mxu0 0.0
    %1255 = vmatpush.xpose.msra.mxu0 0.0
    %1256 = vmatpush.xpose.msra.mxu0 0.0
    %1257 = vmatpush.xpose.msra.mxu0 0.0
    %1258 = vmatpush.xpose.msra.mxu0 0.0
    %1259 = vmatpush.xpose.msra.mxu0 0.0
    %1260 = vmatpush.xpose.msra.mxu0 0.0
    %1261 = vmatpush.xpose.msra.mxu0 0.0
    %1262 = vmatpush.xpose.msra.mxu0 0.0
    %1263 = vmatpush.xpose.msra.mxu0 0.0
    %1264 = vmatpush.xpose.msra.mxu0 0.0
    %1265 = vmatpush.xpose.msra.mxu0 0.0
    %1266 = vmatpush.xpose.msra.mxu0 %v1250
    %1267 = vmatpush.xpose.msra.mxu0 %v1248
    %1268 = vmatmul.f32.gmra.mxu0 %v114
    %v1269 = vpop.f32.mrf.mxu0
    %v1270 = vadd.f32 0.0, %v1269
    %1271 = vdwg.mxu0
    %1272 = vmatpush.xpose.msra.mxu0 0.0
    %1273 = vmatpush.xpose.msra.mxu0 0.0
    %1274 = vmatpush.xpose.msra.mxu0 0.0
    %1275 = vmatpush.xpose.msra.mxu0 0.0
    %1276 = vmatpush.xpose.msra.mxu0 0.0
    %1277 = vmatpush.xpose.msra.mxu0 0.0
    %1278 = vmatpush.xpose.msra.mxu0 0.0
    %1279 = vmatpush.xpose.msra.mxu0 0.0
    %1280 = vmatpush.xpose.msra.mxu0 0.0
    %1281 = vmatpush.xpose.msra.mxu0 0.0
    %1282 = vmatpush.xpose.msra.mxu0 0.0
    %1283 = vmatpush.xpose.msra.mxu0 0.0
    %1284 = vmatpush.xpose.msra.mxu0 0.0
    %1285 = vmatpush.xpose.msra.mxu0 0.0
    %1286 = vmatpush.xpose.msra.mxu0 %v1251
    %1287 = vmatpush.xpose.msra.mxu0 %v1249
    %1288 = vmatmul.f32.gmra.mxu0 %v115
    %v1289 = vpop.f32.mrf.mxu0
    %v1290 = vadd.f32 %v1270, %v1289
    %1291 = vdwg.mxu0
    %vm1292 = vcmask 123904
    %1293 = vst.msk [vmem:[#allocation2] sm:$0x3] %vm1292, %v1290
    // Predicated region
    $region70: #{cdcnn_forward.1} parent=1 // pred_check
      _
    $region71: #{cdcnn_forward.1} parent=1 // pred_check_branch
      %1295 = sbr.rel (0) target = $region73
    $region72: #{cdcnn_forward.1} parent=1 // pred_region
      %1297 = vsyncadd [#allocation3], 0
      %s1299 = sshll.u32 [#allocation2], 4
      %s1300 = int_to_ptr.vmem [resolvable:$true] %s1299
      %s1301 = sshll.u32 %s17, 4
      %s1302 = int_to_ptr.hbm [resolvable:$true] %s1301
      %1304 = dma.vmem_to_hbm [thread:$0]  %s1300, 32, %s1302, [#allocation3]
    $region73: #{cdcnn_forward.1} parent=1 // pred_fallthru
      _
    // Predicated region
    $region74: #{cdcnn_forward.1} parent=1 // pred_check
      _
    $region75: #{cdcnn_forward.1} parent=1 // pred_check_branch
      %1306 = sbr.rel (0) target = $region77
    $region76: #{cdcnn_forward.1} parent=1 // pred_region
      %1308 = dma.done [#allocation3], 32
    $region77: #{cdcnn_forward.1} parent=1 // pred_fallthru
      _
    %1309 = vsyncpa [#allocation3], 1

</llo_original>
